<compile_context>
chip_gen: v7x
topology: tpu7x:2x2x1
jax: 0.10.0
libtpu: 0.0.40
codegen_flags: <defaults>
</compile_context>

<pallas_src>
import jax
import jax.numpy as jnp
from jax.experimental import pallas as pl
from jax.experimental.pallas import tpu as pltpu


def make_attention_kernel(heads: int, dim_head: int, tb: int, n: int, d_pad: int,
                          compute_dtype, approx_softmax: bool):
    inner = heads * dim_head
    m_rows = tb * n

    def kernel(x_ref, wqkv_ref, wout_ref, bout_ref, o_ref):
        # x_ref: (TB, N, D_pad)  wqkv_ref: (D_pad, 3*inner)  wout_ref: (inner, D_pad)
        # bout_ref: (1, D_pad)   o_ref: (TB, N, D_pad)

        # ---- QKV projection on the flattened (TB*N, D_pad) slab (fills the MXU M dim) ----
        x2 = x_ref[...].reshape(m_rows, d_pad).astype(compute_dtype)
        qkv = jnp.dot(x2, wqkv_ref[...],
                      preferred_element_type=jnp.float32)            # (M, 3*inner) f32

        # ---- per-head attention (heads=3, unrolled) ----
        head_outs = []
        for h in range(heads):
            lo = h * dim_head
            qh = qkv[:, lo:lo + dim_head]
            kh = qkv[:, inner + lo:inner + lo + dim_head]
            vh = qkv[:, 2 * inner + lo:2 * inner + lo + dim_head]
            qh = qh.reshape(tb, n, dim_head).astype(compute_dtype)    # scale pre-folded
            kh = kh.reshape(tb, n, dim_head).astype(compute_dtype)
            vh = vh.reshape(tb, n, dim_head).astype(compute_dtype)

            # NT-form QK^T: contraction on the last dim of both operands -> no transpose
            dots = jnp.einsum('bnd,bmd->bnm', qh, kh,
                              preferred_element_type=jnp.float32)     # (TB, N, N) f32

            # softmax(dim=-1); all elementwise math in f32
            mx = jnp.max(dots, axis=-1, keepdims=True)
            e = jnp.exp(dots - mx)
            den = jnp.sum(e, axis=-1, keepdims=True)
            if approx_softmax:
                attn = e * pl.reciprocal(den, approx=True)            # EUP slot
            else:
                attn = e / den
            # dropout(p=0.0) is identity

            oh = jnp.einsum('bnm,bmd->bnd', attn.astype(compute_dtype), vh,
                            preferred_element_type=jnp.float32)       # (TB, N, dh) f32
            head_outs.append(oh.astype(compute_dtype))

        # ---- single output projection: one (M, inner) x (inner, D_pad) MXU matmul ----
        out_heads = jnp.concatenate(head_outs, axis=-1).reshape(m_rows, inner)
        y = jnp.dot(out_heads, wout_ref[...],
                    preferred_element_type=jnp.float32) + bout_ref[...]
        o_ref[...] = y.reshape(tb, n, d_pad).astype(o_ref.dtype)

    return kernel


def _tpu_generation_params():
    """(target_m_rows, vmem_limit_bytes, is_v7x) derived from the local device kind."""
    kind = ""
    try:
        kind = jax.devices()[0].device_kind.lower()
    except Exception:
        pass
    is_v7 = "7" in kind
    wide_mxu = is_v7 or ("v6" in kind)            # 256x256 MXU on v6e / v7x
    target_m = 256 if wide_mxu else 128           # fill the MXU M dim per grid step
    if is_v7:
        vmem_limit = 48 * 1024 * 1024             # leave headroom of 64 MiB physical / TC
    elif ("v5" in kind) or ("v6" in kind):
        vmem_limit = 96 * 1024 * 1024             # of 128 MiB physical
    else:
        vmem_limit = 32 * 1024 * 1024             # conservative for older / unknown chips
    return target_m, vmem_limit, is_v7


def _pick_block_b(B: int, N: int, target_m: int, prefer_multi_step: bool) -> int:
    """Smallest divisor of B with tb*N >= target_m (else tb=B / grid=(1,)).
    On v7x, keep >= 2 parallel steps only if each step still reaches target_m rows."""
    divisors = [d for d in range(1, B + 1) if B % d == 0]
    cands = [d for d in divisors if d * N >= target_m]
    tb = cands[0] if cands else B
    if prefer_multi_step and B >= 2:
        multi = [d for d in divisors if d < B and d * N >= target_m]
        if multi:
            tb = multi[0]
    return max(tb, 1)


def attention_forward(x, w_qkv, w_out, b_out, *, heads, dim_head,
                      compute_dtype=jnp.bfloat16, block_b=None,
                      approx_softmax=True, single_buffer_weights=True):
    B, N, D = x.shape
    inner = heads * dim_head
    scale = dim_head ** (-0.5)
    out_dtype = x.dtype

    # fold softmax scale into the Q columns of the qkv weight (exact: 1/8 is a power of two)
    w_qkv = w_qkv.at[:, :inner].multiply(scale)

    # lane-dense padding of the model dim to a multiple of 128 (unmasked vld/vst)
    LANE = 128
    D_pad = ((D + LANE - 1) // LANE) * LANE
    pad = D_pad - D
    if pad:
        x = jnp.pad(x, ((0, 0), (0, 0), (0, pad)))
        w_qkv = jnp.pad(w_qkv, ((0, pad), (0, 0)))      # zero rows -> same qkv
        w_out = jnp.pad(w_out, ((0, 0), (0, pad)))      # zero cols -> zero padded output
        b_out = jnp.pad(b_out, ((0, pad),))

    x_p = x.astype(compute_dtype)
    w_qkv_p = w_qkv.astype(compute_dtype)
    w_out_p = w_out.astype(compute_dtype)
    b_out_p = b_out.reshape(1, D_pad).astype(jnp.float32)

    target_m, vmem_limit, is_v7 = _tpu_generation_params()
    tb = block_b if block_b is not None else _pick_block_b(B, N, target_m, prefer_multi_step=is_v7)
    assert B % tb == 0, f"block_b={tb} must divide B={B}"
    steps = B // tb

    # Grid-invariant weights: single-buffer whenever the grid actually iterates.
    use_single_buffer = bool(single_buffer_weights and steps > 1)

    def const_spec(shape):
        idx = lambda b: (0,) * len(shape)
        if use_single_buffer:
            return pl.BlockSpec(shape, idx, pipeline_mode=pl.Buffered(1))
        return pl.BlockSpec(shape, idx)

    kernel = make_attention_kernel(heads, dim_head, tb, N, D_pad, compute_dtype, approx_softmax)

    y_pad = pl.pallas_call(
        kernel,
        out_shape=jax.ShapeDtypeStruct((B, N, D_pad), out_dtype),
        grid_spec=pltpu.PrefetchScalarGridSpec(
            num_scalar_prefetch=0,
            grid=(steps,),
            in_specs=[
                pl.BlockSpec((tb, N, D_pad), lambda b: (b, 0, 0)),
                const_spec((D_pad, 3 * inner)),
                const_spec((inner, D_pad)),
                const_spec((1, D_pad)),
            ],
            out_specs=pl.BlockSpec((tb, N, D_pad), lambda b: (b, 0, 0)),
        ),
        compiler_params=pltpu.CompilerParams(
            dimension_semantics=("parallel",),
            vmem_limit_bytes=vmem_limit,
        ),
    )(x_p, w_qkv_p, w_out_p, b_out_p)

    return y_pad[:, :, :D] if pad else y_pad


def reference_forward(x, w_qkv, w_out, b_out, *, heads, dim_head):
    # pure-JAX f32 reference (same math as the PyTorch module)
    B, N, D = x.shape
    scale = dim_head ** (-0.5)
    qkv = x @ w_qkv
    q, k, v = jnp.split(qkv, 3, axis=-1)

    def to_heads(t):
        return t.reshape(B, N, heads, dim_head).transpose(0, 2, 1, 3)

    q, k, v = to_heads(q), to_heads(k), to_heads(v)
    dots = jnp.einsum('bhnd,bhmd->bhnm', q, k) * scale
    attn = jax.nn.softmax(dots, axis=-1)
    out = jnp.einsum('bhnm,bhmd->bhnd', attn, v)
    out = out.transpose(0, 2, 1, 3).reshape(B, N, heads * dim_head)
    return out @ w_out + b_out


if __name__ == "__main__":
    # Module config: heads=3, dim_head=64 -> inner_dim=192, project_out=True
    heads = 3
    dim_head = 64
    dim = 32          # model dim (small)
    B, N = 2, 8       # small batch / sequence
    inner_dim = heads * dim_head

    key = jax.random.PRNGKey(0)
    kx, kq, kw, kb = jax.random.split(key, 4)

    x = jax.random.normal(kx, (B, N, dim), dtype=jnp.float32)
    # nn.Linear weight is (out, in); we store the transposed (in, out) form
    w_qkv = jax.random.normal(kq, (dim, 3 * inner_dim), dtype=jnp.float32) * 0.05
    w_out = jax.random.normal(kw, (inner_dim, dim), dtype=jnp.float32) * 0.05
    b_out = jax.random.normal(kb, (dim,), dtype=jnp.float32) * 0.05

    y_ref = reference_forward(x, w_qkv, w_out, b_out, heads=heads, dim_head=dim_head)

    # f32 MXU path with exact softmax division (tight check)
    y32 = attention_forward(x, w_qkv, w_out, b_out, heads=heads, dim_head=dim_head,
                            compute_dtype=jnp.float32, approx_softmax=False)
    y32 = jax.block_until_ready(y32)
    assert y32.shape == (B, N, dim)
    assert jnp.allclose(y32, y_ref, atol=2e-3, rtol=2e-3), "f32 kernel mismatch vs reference"

    # bf16 MXU inputs, f32 accumulation + f32 softmax (default fast path on all generations)
    ybf = attention_forward(x, w_qkv, w_out, b_out, heads=heads, dim_head=dim_head,
                            compute_dtype=jnp.bfloat16)
    ybf = jax.block_until_ready(ybf)
    assert ybf.shape == (B, N, dim)
    assert jnp.allclose(ybf, y_ref, atol=5e-2, rtol=5e-2), "bf16 kernel mismatch vs reference"

    print("KERNEL_OK")
</pallas_src>

<mosaic_0001>
module attributes {stable_mosaic.version = 11 : i64} {
  func.func @kernel(%arg0: i32, %arg1: memref<2x8x128xf32, #tpu.memory_space<vmem>>, %arg2: memref<128x576xf32, #tpu.memory_space<vmem>>, %arg3: memref<192x128xf32, #tpu.memory_space<vmem>>, %arg4: memref<1x128xf32, #tpu.memory_space<vmem>>, %arg5: memref<2x8x128xf32, #tpu.memory_space<vmem>>) attributes {dimension_semantics = [#tpu.dimension_semantics<parallel>], iteration_bounds = array<i64: 1>, scalar_prefetch = 0 : i64, scratch_operands = 0 : i64, tpu.core_type = #tpu.core_type<tc>, window_params = [{transform_indices = @transform_0, window_bounds = array<i64: 2, 8, 128>}, {pipeline_mode = #tpu.pipeline_mode<synchronous>, transform_indices = @transform_1, window_bounds = array<i64: 128, 576>}, {pipeline_mode = #tpu.pipeline_mode<synchronous>, transform_indices = @transform_2, window_bounds = array<i64: 192, 128>}, {pipeline_mode = #tpu.pipeline_mode<synchronous>, transform_indices = @transform_3, window_bounds = array<i64: 1, 128>}, {transform_indices = @transform_4, window_bounds = array<i64: 2, 8, 128>}]} {
    %c0 = arith.constant 0 : index
    %c0_0 = arith.constant 0 : index
    %c0_1 = arith.constant 0 : index
    %0 = vector.load %arg1[%c0, %c0_0, %c0_1] : memref<2x8x128xf32, #tpu.memory_space<vmem>>, vector<2x8x128xf32>
    %1 = vector.shape_cast %0 : vector<2x8x128xf32> to vector<16x128xf32>
    %c0_2 = arith.constant 0 : index
    %c0_3 = arith.constant 0 : index
    %2 = vector.load %arg2[%c0_2, %c0_3] : memref<128x576xf32, #tpu.memory_space<vmem>>, vector<128x576xf32>
    %cst = arith.constant dense<0.000000e+00> : vector<16x576xf32>
    %3 = tpu.matmul %1, %2, %cst {dimension_numbers = #tpu.dot_dimension_numbers<[1], [0], [0], [1], [0, 0, 1, 1], [], []>} : vector<16x128xf32>, vector<128x576xf32>, vector<16x576xf32> -> vector<16x576xf32>
    %4 = vector.extract_strided_slice %3 {offsets = [0, 0], sizes = [16, 64], strides = [1, 1]} : vector<16x576xf32> to vector<16x64xf32>
    %5 = vector.extract_strided_slice %3 {offsets = [0, 192], sizes = [16, 64], strides = [1, 1]} : vector<16x576xf32> to vector<16x64xf32>
    %6 = vector.extract_strided_slice %3 {offsets = [0, 384], sizes = [16, 64], strides = [1, 1]} : vector<16x576xf32> to vector<16x64xf32>
    %7 = vector.shape_cast %4 : vector<16x64xf32> to vector<2x8x64xf32>
    %8 = vector.shape_cast %5 : vector<16x64xf32> to vector<2x8x64xf32>
    %9 = vector.shape_cast %6 : vector<16x64xf32> to vector<2x8x64xf32>
    "tpu.trace_start"() <{level = 10 : i32, message = "bnd,bmd->bnm"}> : () -> ()
    %cst_4 = arith.constant dense<0.000000e+00> : vector<2x8x8xf32>
    %10 = tpu.matmul %7, %8, %cst_4 {dimension_numbers = #tpu.dot_dimension_numbers<[2], [2], [1], [1], [0, 0, 0, 1, 1, 1], [0], [0]>} : vector<2x8x64xf32>, vector<2x8x64xf32>, vector<2x8x8xf32> -> vector<2x8x8xf32>
    "tpu.trace_stop"() : () -> ()
    %cst_5 = arith.constant dense<0xFF800000> : vector<2x8xf32>
    %11 = vector.multi_reduction <maximumf>, %10, %cst_5 [2] : vector<2x8x8xf32> to vector<2x8xf32>
    %12 = vector.shape_cast %11 : vector<2x8xf32> to vector<2x8x1xf32>
    %13 = vector.broadcast %12 : vector<2x8x1xf32> to vector<2x8x8xf32>
    %14 = arith.subf %10, %13 : vector<2x8x8xf32>
    %15 = math.exp %14 : vector<2x8x8xf32>
    %cst_6 = arith.constant dense<0.000000e+00> : vector<2x8xf32>
    %16 = vector.multi_reduction <add>, %15, %cst_6 [2] : vector<2x8x8xf32> to vector<2x8xf32>
    %17 = vector.shape_cast %16 : vector<2x8xf32> to vector<2x8x1xf32>
    %18 = vector.broadcast %17 : vector<2x8x1xf32> to vector<2x8x8xf32>
    %19 = arith.divf %15, %18 : vector<2x8x8xf32>
    "tpu.trace_start"() <{level = 10 : i32, message = "bnm,bmd->bnd"}> : () -> ()
    %cst_7 = arith.constant dense<0.000000e+00> : vector<2x8x64xf32>
    %20 = tpu.matmul %19, %9, %cst_7 {dimension_numbers = #tpu.dot_dimension_numbers<[2], [1], [1], [2], [0, 0, 0, 1, 1, 2], [0], [0]>} : vector<2x8x8xf32>, vector<2x8x64xf32>, vector<2x8x64xf32> -> vector<2x8x64xf32>
    "tpu.trace_stop"() : () -> ()
    %21 = vector.extract_strided_slice %3 {offsets = [0, 64], sizes = [16, 64], strides = [1, 1]} : vector<16x576xf32> to vector<16x64xf32>
    %22 = vector.extract_strided_slice %3 {offsets = [0, 256], sizes = [16, 64], strides = [1, 1]} : vector<16x576xf32> to vector<16x64xf32>
    %23 = vector.extract_strided_slice %3 {offsets = [0, 448], sizes = [16, 64], strides = [1, 1]} : vector<16x576xf32> to vector<16x64xf32>
    %24 = vector.shape_cast %21 : vector<16x64xf32> to vector<2x8x64xf32>
    %25 = vector.shape_cast %22 : vector<16x64xf32> to vector<2x8x64xf32>
    %26 = vector.shape_cast %23 : vector<16x64xf32> to vector<2x8x64xf32>
    "tpu.trace_start"() <{level = 10 : i32, message = "bnd,bmd->bnm"}> : () -> ()
    %cst_8 = arith.constant dense<0.000000e+00> : vector<2x8x8xf32>
    %27 = tpu.matmul %24, %25, %cst_8 {dimension_numbers = #tpu.dot_dimension_numbers<[2], [2], [1], [1], [0, 0, 0, 1, 1, 1], [0], [0]>} : vector<2x8x64xf32>, vector<2x8x64xf32>, vector<2x8x8xf32> -> vector<2x8x8xf32>
    "tpu.trace_stop"() : () -> ()
    %cst_9 = arith.constant dense<0xFF800000> : vector<2x8xf32>
    %28 = vector.multi_reduction <maximumf>, %27, %cst_9 [2] : vector<2x8x8xf32> to vector<2x8xf32>
    %29 = vector.shape_cast %28 : vector<2x8xf32> to vector<2x8x1xf32>
    %30 = vector.broadcast %29 : vector<2x8x1xf32> to vector<2x8x8xf32>
    %31 = arith.subf %27, %30 : vector<2x8x8xf32>
    %32 = math.exp %31 : vector<2x8x8xf32>
    %cst_10 = arith.constant dense<0.000000e+00> : vector<2x8xf32>
    %33 = vector.multi_reduction <add>, %32, %cst_10 [2] : vector<2x8x8xf32> to vector<2x8xf32>
    %34 = vector.shape_cast %33 : vector<2x8xf32> to vector<2x8x1xf32>
    %35 = vector.broadcast %34 : vector<2x8x1xf32> to vector<2x8x8xf32>
    %36 = arith.divf %32, %35 : vector<2x8x8xf32>
    "tpu.trace_start"() <{level = 10 : i32, message = "bnm,bmd->bnd"}> : () -> ()
    %cst_11 = arith.constant dense<0.000000e+00> : vector<2x8x64xf32>
    %37 = tpu.matmul %36, %26, %cst_11 {dimension_numbers = #tpu.dot_dimension_numbers<[2], [1], [1], [2], [0, 0, 0, 1, 1, 2], [0], [0]>} : vector<2x8x8xf32>, vector<2x8x64xf32>, vector<2x8x64xf32> -> vector<2x8x64xf32>
    "tpu.trace_stop"() : () -> ()
    %38 = vector.extract_strided_slice %3 {offsets = [0, 128], sizes = [16, 64], strides = [1, 1]} : vector<16x576xf32> to vector<16x64xf32>
    %39 = vector.extract_strided_slice %3 {offsets = [0, 320], sizes = [16, 64], strides = [1, 1]} : vector<16x576xf32> to vector<16x64xf32>
    %40 = vector.extract_strided_slice %3 {offsets = [0, 512], sizes = [16, 64], strides = [1, 1]} : vector<16x576xf32> to vector<16x64xf32>
    %41 = vector.shape_cast %38 : vector<16x64xf32> to vector<2x8x64xf32>
    %42 = vector.shape_cast %39 : vector<16x64xf32> to vector<2x8x64xf32>
    %43 = vector.shape_cast %40 : vector<16x64xf32> to vector<2x8x64xf32>
    "tpu.trace_start"() <{level = 10 : i32, message = "bnd,bmd->bnm"}> : () -> ()
    %cst_12 = arith.constant dense<0.000000e+00> : vector<2x8x8xf32>
    %44 = tpu.matmul %41, %42, %cst_12 {dimension_numbers = #tpu.dot_dimension_numbers<[2], [2], [1], [1], [0, 0, 0, 1, 1, 1], [0], [0]>} : vector<2x8x64xf32>, vector<2x8x64xf32>, vector<2x8x8xf32> -> vector<2x8x8xf32>
    "tpu.trace_stop"() : () -> ()
    %cst_13 = arith.constant dense<0xFF800000> : vector<2x8xf32>
    %45 = vector.multi_reduction <maximumf>, %44, %cst_13 [2] : vector<2x8x8xf32> to vector<2x8xf32>
    %46 = vector.shape_cast %45 : vector<2x8xf32> to vector<2x8x1xf32>
    %47 = vector.broadcast %46 : vector<2x8x1xf32> to vector<2x8x8xf32>
    %48 = arith.subf %44, %47 : vector<2x8x8xf32>
    %49 = math.exp %48 : vector<2x8x8xf32>
    %cst_14 = arith.constant dense<0.000000e+00> : vector<2x8xf32>
    %50 = vector.multi_reduction <add>, %49, %cst_14 [2] : vector<2x8x8xf32> to vector<2x8xf32>
    %51 = vector.shape_cast %50 : vector<2x8xf32> to vector<2x8x1xf32>
    %52 = vector.broadcast %51 : vector<2x8x1xf32> to vector<2x8x8xf32>
    %53 = arith.divf %49, %52 : vector<2x8x8xf32>
    "tpu.trace_start"() <{level = 10 : i32, message = "bnm,bmd->bnd"}> : () -> ()
    %cst_15 = arith.constant dense<0.000000e+00> : vector<2x8x64xf32>
    %54 = tpu.matmul %53, %43, %cst_15 {dimension_numbers = #tpu.dot_dimension_numbers<[2], [1], [1], [2], [0, 0, 0, 1, 1, 2], [0], [0]>} : vector<2x8x8xf32>, vector<2x8x64xf32>, vector<2x8x64xf32> -> vector<2x8x64xf32>
    "tpu.trace_stop"() : () -> ()
    %55 = tpu.concatenate %20, %37, %54 in 2 : vector<2x8x64xf32>, vector<2x8x64xf32>, vector<2x8x64xf32> -> vector<2x8x192xf32>
    %56 = vector.shape_cast %55 : vector<2x8x192xf32> to vector<16x192xf32>
    %c0_16 = arith.constant 0 : index
    %c0_17 = arith.constant 0 : index
    %57 = vector.load %arg3[%c0_16, %c0_17] : memref<192x128xf32, #tpu.memory_space<vmem>>, vector<192x128xf32>
    %cst_18 = arith.constant dense<0.000000e+00> : vector<16x128xf32>
    %58 = tpu.matmul %56, %57, %cst_18 {dimension_numbers = #tpu.dot_dimension_numbers<[1], [0], [0], [1], [0, 0, 1, 1], [], []>} : vector<16x192xf32>, vector<192x128xf32>, vector<16x128xf32> -> vector<16x128xf32>
    %c0_19 = arith.constant 0 : index
    %c0_20 = arith.constant 0 : index
    %59 = vector.load %arg4[%c0_19, %c0_20] : memref<1x128xf32, #tpu.memory_space<vmem>>, vector<1x128xf32>
    %60 = vector.broadcast %59 : vector<1x128xf32> to vector<16x128xf32>
    %61 = arith.addf %58, %60 : vector<16x128xf32>
    %62 = vector.shape_cast %61 : vector<16x128xf32> to vector<2x8x128xf32>
    %c0_21 = arith.constant 0 : index
    %c0_22 = arith.constant 0 : index
    %c0_23 = arith.constant 0 : index
    %63 = vector.load %arg5[%c0_21, %c0_22, %c0_23] : memref<2x8x128xf32, #tpu.memory_space<vmem>>, vector<2x8x128xf32>
    tpu.vector_store %arg5[%c0_21, %c0_22, %c0_23], %62 {strides = array<i32>} : memref<2x8x128xf32, #tpu.memory_space<vmem>>, vector<2x8x128xf32>,
    return
  }
  func.func @transform_0(%arg0: i32) -> (i32, i32, i32) {
    %c0_i32 = arith.constant 0 : i32
    %c0_i32_0 = arith.constant 0 : i32
    %c0_i32_1 = arith.constant 0 : i32
    return %arg0, %c0_i32, %c0_i32_0 : i32, i32, i32
  }
  func.func @transform_1(%arg0: i32) -> (i32, i32) {
    %c0_i32 = arith.constant 0 : i32
    %c0_i32_0 = arith.constant 0 : i32
    %c0_i32_1 = arith.constant 0 : i32
    return %c0_i32, %c0_i32_0 : i32, i32
  }
  func.func @transform_2(%arg0: i32) -> (i32, i32) {
    %c0_i32 = arith.constant 0 : i32
    %c0_i32_0 = arith.constant 0 : i32
    %c0_i32_1 = arith.constant 0 : i32
    return %c0_i32, %c0_i32_0 : i32, i32
  }
  func.func @transform_3(%arg0: i32) -> (i32, i32) {
    %c0_i32 = arith.constant 0 : i32
    %c0_i32_0 = arith.constant 0 : i32
    %c0_i32_1 = arith.constant 0 : i32
    return %c0_i32, %c0_i32_0 : i32, i32
  }
  func.func @transform_4(%arg0: i32) -> (i32, i32, i32) {
    %c0_i32 = arith.constant 0 : i32
    %c0_i32_0 = arith.constant 0 : i32
    %c0_i32_1 = arith.constant 0 : i32
    return %arg0, %c0_i32, %c0_i32_0 : i32, i32, i32
  }
}

</mosaic_0001>

<llo_original>
// kernel: tpu_custom_call.1
$region0: #{tpu_custom_call.1}
  #allocation0 [shape = 'u32[]', space=smem, size = 0x4, offset = 0x4, fixed_abs, tag = 'smem constant byte address 0x4 - core index']
  #allocation1 [shape = 'u32[144,128]{1,0:T(1,128)}', space=vmem, size = 0x12000, scoped, tag = 'internal scratch']
  %s0 = inlined_call_operand.vmem [shape: f32[2,8,128], index: 0, kind: input, shape index: {}]
  %s1 = inlined_call_operand.vmem [shape: f32[128,576], index: 1, kind: input, shape index: {}]
  %s2 = inlined_call_operand.vmem [shape: f32[192,128], index: 2, kind: input, shape index: {}]
  %s3 = inlined_call_operand.vmem [shape: f32[1,128], index: 3, kind: input, shape index: {}]
  %s4 = inlined_call_operand.hbm [shape: f32[2,8,128], index: 4, kind: output, shape index: {}]
  %s5 = sld [smem:[#allocation0]]
  $region26: #{tpu_custom_call.1} parent=0
    _
  %s7 = ssub.s32 1, %s5
  %s8 = scalar_select 0, %s7, %s5
  $region1: #{tpu_custom_call.1} parent=0
    #allocation2 [shape = 'u8[8192]{0}', space=vmem, size = 0x2000, scoped, tag = 'output window, operand 0, single buffered']
    #allocation3 [shape = 's32[1]{0}', space=sflag, size = 0x4, scoped, tag = 'scoped memory for tpu_custom_call.1']
    %9 = vsyncpa [#allocation3], 0
    // Predicated region
    $region2: #{tpu_custom_call.1} parent=1 // pred_check
      _
    $region3: #{tpu_custom_call.1} parent=1 // pred_check_branch
      %11 = sbr.rel (0) target = $region5
    $region4: #{tpu_custom_call.1} parent=1 // pred_region
      _
    $region5: #{tpu_custom_call.1} parent=1 // pred_fallthru
      _
    // Predicated region
    $region6: #{tpu_custom_call.1} parent=1 // pred_check
      _
    $region7: #{tpu_custom_call.1} parent=1 // pred_check_branch
      %13 = sbr.rel (0) target = $region9
    $region8: #{tpu_custom_call.1} parent=1 // pred_region
      _
    $region9: #{tpu_custom_call.1} parent=1 // pred_fallthru
      _
    // Predicated region
    $region10: #{tpu_custom_call.1} parent=1 // pred_check
      _
    $region11: #{tpu_custom_call.1} parent=1 // pred_check_branch
      %15 = sbr.rel (0) target = $region13
    $region12: #{tpu_custom_call.1} parent=1 // pred_region
      _
    $region13: #{tpu_custom_call.1} parent=1 // pred_fallthru
      _
    // Predicated region
    $region14: #{tpu_custom_call.1} parent=1 // pred_check
      _
    $region15: #{tpu_custom_call.1} parent=1 // pred_check_branch
      %17 = sbr.rel (0) target = $region17
    $region16: #{tpu_custom_call.1} parent=1 // pred_region
      _
    $region17: #{tpu_custom_call.1} parent=1 // pred_fallthru
      _
    %v18 = vld [vmem:[%s0] sm:$0xff]
    %v19 = vld [vmem:[%s0 + $0x8] sm:$0xff]
    %v20 = vld [vmem:[%s1] sm:$0xff]
    %v21 = vld [vmem:[%s1 + $0x8] sm:$0xff]
    %v22 = vld [vmem:[%s1 + $0x10] sm:$0xff]
    %v23 = vld [vmem:[%s1 + $0x18] sm:$0xff]
    %v24 = vld [vmem:[%s1 + $0x20] sm:$0xff]
    %v25 = vld [vmem:[%s1 + $0x28] sm:$0xff]
    %v26 = vld [vmem:[%s1 + $0x30] sm:$0xff]
    %v27 = vld [vmem:[%s1 + $0x38] sm:$0xff]
    %v28 = vld [vmem:[%s1 + $0x40] sm:$0xff]
    %v29 = vld [vmem:[%s1 + $0x48] sm:$0xff]
    %v30 = vld [vmem:[%s1 + $0x50] sm:$0xff]
    %v31 = vld [vmem:[%s1 + $0x58] sm:$0xff]
    %v32 = vld [vmem:[%s1 + $0x60] sm:$0xff]
    %v33 = vld [vmem:[%s1 + $0x68] sm:$0xff]
    %v34 = vld [vmem:[%s1 + $0x70] sm:$0xff]
    %v35 = vld [vmem:[%s1 + $0x78] sm:$0xff]
    %v36 = vld [vmem:[%s1 + $0x80] sm:$0xff]
    %v37 = vld [vmem:[%s1 + $0x88] sm:$0xff]
    %v38 = vld [vmem:[%s1 + $0x90] sm:$0xff]
    %v39 = vld [vmem:[%s1 + $0x98] sm:$0xff]
    %v40 = vld [vmem:[%s1 + $0xa0] sm:$0xff]
    %v41 = vld [vmem:[%s1 + $0xa8] sm:$0xff]
    %v42 = vld [vmem:[%s1 + $0xb0] sm:$0xff]
    %v43 = vld [vmem:[%s1 + $0xb8] sm:$0xff]
    %v44 = vld [vmem:[%s1 + $0xc0] sm:$0xff]
    %v45 = vld [vmem:[%s1 + $0xc8] sm:$0xff]
    %v46 = vld [vmem:[%s1 + $0xd0] sm:$0xff]
    %v47 = vld [vmem:[%s1 + $0xd8] sm:$0xff]
    %v48 = vld [vmem:[%s1 + $0xe0] sm:$0xff]
    %v49 = vld [vmem:[%s1 + $0xe8] sm:$0xff]
    %v50 = vld [vmem:[%s1 + $0xf0] sm:$0xff]
    %v51 = vld [vmem:[%s1 + $0xf8] sm:$0xff]
    %v52 = vld [vmem:[%s1 + $0x100] sm:$0xff]
    %v53 = vld [vmem:[%s1 + $0x108] sm:$0xff]
    %v54 = vld [vmem:[%s1 + $0x110] sm:$0xff]
    %v55 = vld [vmem:[%s1 + $0x118] sm:$0xff]
    %v56 = vld [vmem:[%s1 + $0x120] sm:$0xff]
    %v57 = vld [vmem:[%s1 + $0x128] sm:$0xff]
    %v58 = vld [vmem:[%s1 + $0x130] sm:$0xff]
    %v59 = vld [vmem:[%s1 + $0x138] sm:$0xff]
    %v60 = vld [vmem:[%s1 + $0x140] sm:$0xff]
    %v61 = vld [vmem:[%s1 + $0x148] sm:$0xff]
    %v62 = vld [vmem:[%s1 + $0x150] sm:$0xff]
    %v63 = vld [vmem:[%s1 + $0x158] sm:$0xff]
    %v64 = vld [vmem:[%s1 + $0x160] sm:$0xff]
    %v65 = vld [vmem:[%s1 + $0x168] sm:$0xff]
    %v66 = vld [vmem:[%s1 + $0x170] sm:$0xff]
    %v67 = vld [vmem:[%s1 + $0x178] sm:$0xff]
    %v68 = vld [vmem:[%s1 + $0x180] sm:$0xff]
    %v69 = vld [vmem:[%s1 + $0x188] sm:$0xff]
    %v70 = vld [vmem:[%s1 + $0x190] sm:$0xff]
    %v71 = vld [vmem:[%s1 + $0x198] sm:$0xff]
    %v72 = vld [vmem:[%s1 + $0x1a0] sm:$0xff]
    %v73 = vld [vmem:[%s1 + $0x1a8] sm:$0xff]
    %v74 = vld [vmem:[%s1 + $0x1b0] sm:$0xff]
    %v75 = vld [vmem:[%s1 + $0x1b8] sm:$0xff]
    %v76 = vld [vmem:[%s1 + $0x1c0] sm:$0xff]
    %v77 = vld [vmem:[%s1 + $0x1c8] sm:$0xff]
    %v78 = vld [vmem:[%s1 + $0x1d0] sm:$0xff]
    %v79 = vld [vmem:[%s1 + $0x1d8] sm:$0xff]
    %v80 = vld [vmem:[%s1 + $0x1e0] sm:$0xff]
    %v81 = vld [vmem:[%s1 + $0x1e8] sm:$0xff]
    %v82 = vld [vmem:[%s1 + $0x1f0] sm:$0xff]
    %v83 = vld [vmem:[%s1 + $0x1f8] sm:$0xff]
    %v84 = vld [vmem:[%s1 + $0x200] sm:$0xff]
    %v85 = vld [vmem:[%s1 + $0x208] sm:$0xff]
    %v86 = vld [vmem:[%s1 + $0x210] sm:$0xff]
    %v87 = vld [vmem:[%s1 + $0x218] sm:$0xff]
    %v88 = vld [vmem:[%s1 + $0x220] sm:$0xff]
    %v89 = vld [vmem:[%s1 + $0x228] sm:$0xff]
    %v90 = vld [vmem:[%s1 + $0x230] sm:$0xff]
    %v91 = vld [vmem:[%s1 + $0x238] sm:$0xff]
    %v92 = vld [vmem:[%s1 + $0x240] sm:$0xff]
    %v93 = vld [vmem:[%s1 + $0x248] sm:$0xff]
    %v94 = vld [vmem:[%s1 + $0x250] sm:$0xff]
    %v95 = vld [vmem:[%s1 + $0x258] sm:$0xff]
    %v96 = vld [vmem:[%s1 + $0x260] sm:$0xff]
    %v97 = vld [vmem:[%s1 + $0x268] sm:$0xff]
    %v98 = vld [vmem:[%s1 + $0x270] sm:$0xff]
    %v99 = vld [vmem:[%s1 + $0x278] sm:$0xff]
    %100 = vmatprep.subr.mxu0 %v21
    %101 = vmatpush1.msra.mxu0 %v20
    %102 = vmatprep.subr.mxu0 %v26
    %103 = vmatpush1.msra.mxu0 %v25
    %104 = vmatprep.subr.mxu0 %v31
    %105 = vmatpush1.msra.mxu0 %v30
    %106 = vmatprep.subr.mxu0 %v36
    %107 = vmatpush1.msra.mxu0 %v35
    %108 = vmatprep.subr.mxu0 %v41
    %109 = vmatpush1.msra.mxu0 %v40
    %110 = vmatprep.subr.mxu0 %v46
    %111 = vmatpush1.msra.mxu0 %v45
    %112 = vmatprep.subr.mxu0 %v51
    %113 = vmatpush1.msra.mxu0 %v50
    %114 = vmatprep.subr.mxu0 %v56
    %115 = vmatpush1.msra.mxu0 %v55
    %116 = vmatprep.subr.mxu0 %v61
    %117 = vmatpush1.msra.mxu0 %v60
    %118 = vmatprep.subr.mxu0 %v66
    %119 = vmatpush1.msra.mxu0 %v65
    %120 = vmatprep.subr.mxu0 %v71
    %121 = vmatpush1.msra.mxu0 %v70
    %122 = vmatprep.subr.mxu0 %v76
    %123 = vmatpush1.msra.mxu0 %v75
    %124 = vmatprep.subr.mxu0 %v81
    %125 = vmatpush1.msra.mxu0 %v80
    %126 = vmatprep.subr.mxu0 %v86
    %127 = vmatpush1.msra.mxu0 %v85
    %128 = vmatprep.subr.mxu0 %v91
    %129 = vmatpush1.msra.mxu0 %v90
    %130 = vmatprep.subr.mxu0 %v96
    %131 = vmatpush1.msra.mxu0 %v95
    %132 = vmatprep.subr.mxu0 0.0
    %133 = vmatpush1.msra.mxu0 0.0
    %134 = vmatprep.subr.mxu0 0.0
    %135 = vmatpush1.msra.mxu0 0.0
    %136 = vmatprep.subr.mxu0 0.0
    %137 = vmatpush1.msra.mxu0 0.0
    %138 = vmatprep.subr.mxu0 0.0
    %139 = vmatpush1.msra.mxu0 0.0
    %140 = vmatprep.subr.mxu0 0.0
    %141 = vmatpush1.msra.mxu0 0.0
    %142 = vmatprep.subr.mxu0 0.0
    %143 = vmatpush1.msra.mxu0 0.0
    %144 = vmatprep.subr.mxu0 0.0
    %145 = vmatpush1.msra.mxu0 0.0
    %146 = vmatprep.subr.mxu0 0.0
    %147 = vmatpush1.msra.mxu0 0.0
    %148 = vmatprep.subr.mxu0 0.0
    %149 = vmatpush1.msra.mxu0 0.0
    %150 = vmatprep.subr.mxu0 0.0
    %151 = vmatpush1.msra.mxu0 0.0
    %152 = vmatprep.subr.mxu0 0.0
    %153 = vmatpush1.msra.mxu0 0.0
    %154 = vmatprep.subr.mxu0 0.0
    %155 = vmatpush1.msra.mxu0 0.0
    %156 = vmatprep.subr.mxu0 0.0
    %157 = vmatpush1.msra.mxu0 0.0
    %158 = vmatprep.subr.mxu0 0.0
    %159 = vmatpush1.msra.mxu0 0.0
    %160 = vmatprep.subr.mxu0 0.0
    %161 = vmatpush1.msra.mxu0 0.0
    %162 = vmatprep.subr.mxu0 0.0
    %163 = vmatpush1.msra.mxu0 0.0
    %164 = vmatprep.mubr.f32.mxu0 0.0
    %165 = vmatmul.mubr.f32.gmra.mrb[0].mxu0 %v18
    %v166 = vpop.f32.mrb[0].mxu0
    %v167 = vadd.f32 0.0, %v166
    %v168 = vpop.f32.mrb[0].mxu0
    %v169 = vadd.f32 0.0, %v168
    %170 = vmatprep.mubr.f32.mxu0 0.0
    %171 = vmatmul.mubr.f32.gmra.mrb[0].mxu0 %v19
    %v172 = vpop.f32.mrb[0].mxu0
    %v173 = vadd.f32 0.0, %v172
    %v174 = vpop.f32.mrb[0].mxu0
    %v175 = vadd.f32 0.0, %v174
    %176 = vdwg.mxu0
    %177 = vmatprep.subr.mxu0 %v23
    %178 = vmatpush1.msra.mxu0 %v22
    %179 = vmatprep.subr.mxu0 %v28
    %180 = vmatpush1.msra.mxu0 %v27
    %181 = vmatprep.subr.mxu0 %v33
    %182 = vmatpush1.msra.mxu0 %v32
    %183 = vmatprep.subr.mxu0 %v38
    %184 = vmatpush1.msra.mxu0 %v37
    %185 = vmatprep.subr.mxu0 %v43
    %186 = vmatpush1.msra.mxu0 %v42
    %187 = vmatprep.subr.mxu0 %v48
    %188 = vmatpush1.msra.mxu0 %v47
    %189 = vmatprep.subr.mxu0 %v53
    %190 = vmatpush1.msra.mxu0 %v52
    %191 = vmatprep.subr.mxu0 %v58
    %192 = vmatpush1.msra.mxu0 %v57
    %193 = vmatprep.subr.mxu0 %v63
    %194 = vmatpush1.msra.mxu0 %v62
    %195 = vmatprep.subr.mxu0 %v68
    %196 = vmatpush1.msra.mxu0 %v67
    %197 = vmatprep.subr.mxu0 %v73
    %198 = vmatpush1.msra.mxu0 %v72
    %199 = vmatprep.subr.mxu0 %v78
    %200 = vmatpush1.msra.mxu0 %v77
    %201 = vmatprep.subr.mxu0 %v83
    %202 = vmatpush1.msra.mxu0 %v82
    %203 = vmatprep.subr.mxu0 %v88
    %204 = vmatpush1.msra.mxu0 %v87
    %205 = vmatprep.subr.mxu0 %v93
    %206 = vmatpush1.msra.mxu0 %v92
    %207 = vmatprep.subr.mxu0 %v98
    %208 = vmatpush1.msra.mxu0 %v97
    %209 = vmatprep.subr.mxu0 0.0
    %210 = vmatpush1.msra.mxu0 0.0
    %211 = vmatprep.subr.mxu0 0.0
    %212 = vmatpush1.msra.mxu0 0.0
    %213 = vmatprep.subr.mxu0 0.0
    %214 = vmatpush1.msra.mxu0 0.0
    %215 = vmatprep.subr.mxu0 0.0
    %216 = vmatpush1.msra.mxu0 0.0
    %217 = vmatprep.subr.mxu0 0.0
    %218 = vmatpush1.msra.mxu0 0.0
    %219 = vmatprep.subr.mxu0 0.0
    %220 = vmatpush1.msra.mxu0 0.0
    %221 = vmatprep.subr.mxu0 0.0
    %222 = vmatpush1.msra.mxu0 0.0
    %223 = vmatprep.subr.mxu0 0.0
    %224 = vmatpush1.msra.mxu0 0.0
    %225 = vmatprep.subr.mxu0 0.0
    %226 = vmatpush1.msra.mxu0 0.0
    %227 = vmatprep.subr.mxu0 0.0
    %228 = vmatpush1.msra.mxu0 0.0
    %229 = vmatprep.subr.mxu0 0.0
    %230 = vmatpush1.msra.mxu0 0.0
    %231 = vmatprep.subr.mxu0 0.0
    %232 = vmatpush1.msra.mxu0 0.0
    %233 = vmatprep.subr.mxu0 0.0
    %234 = vmatpush1.msra.mxu0 0.0
    %235 = vmatprep.subr.mxu0 0.0
    %236 = vmatpush1.msra.mxu0 0.0
    %237 = vmatprep.subr.mxu0 0.0
    %238 = vmatpush1.msra.mxu0 0.0
    %239 = vmatprep.subr.mxu0 0.0
    %240 = vmatpush1.msra.mxu0 0.0
    %241 = vmatprep.mubr.f32.mxu0 0.0
    %242 = vmatmul.mubr.f32.gmra.mrb[0].mxu0 %v18
    %v243 = vpop.f32.mrb[0].mxu0
    %v244 = vadd.f32 0.0, %v243
    %v245 = vpop.f32.mrb[0].mxu0
    %v246 = vadd.f32 0.0, %v245
    %247 = vmatprep.mubr.f32.mxu0 0.0
    %248 = vmatmul.mubr.f32.gmra.mrb[0].mxu0 %v19
    %v249 = vpop.f32.mrb[0].mxu0
    %v250 = vadd.f32 0.0, %v249
    %v251 = vpop.f32.mrb[0].mxu0
    %v252 = vadd.f32 0.0, %v251
    %253 = vdwg.mxu0
    %254 = vmatprep.subr.mxu0 0.0
    %255 = vmatpush1.msra.mxu0 %v24
    %256 = vmatprep.subr.mxu0 0.0
    %257 = vmatpush1.msra.mxu0 %v29
    %258 = vmatprep.subr.mxu0 0.0
    %259 = vmatpush1.msra.mxu0 %v34
    %260 = vmatprep.subr.mxu0 0.0
    %261 = vmatpush1.msra.mxu0 %v39
    %262 = vmatprep.subr.mxu0 0.0
    %263 = vmatpush1.msra.mxu0 %v44
    %264 = vmatprep.subr.mxu0 0.0
    %265 = vmatpush1.msra.mxu0 %v49
    %266 = vmatprep.subr.mxu0 0.0
    %267 = vmatpush1.msra.mxu0 %v54
    %268 = vmatprep.subr.mxu0 0.0
    %269 = vmatpush1.msra.mxu0 %v59
    %270 = vmatprep.subr.mxu0 0.0
    %271 = vmatpush1.msra.mxu0 %v64
    %272 = vmatprep.subr.mxu0 0.0
    %273 = vmatpush1.msra.mxu0 %v69
    %274 = vmatprep.subr.mxu0 0.0
    %275 = vmatpush1.msra.mxu0 %v74
    %276 = vmatprep.subr.mxu0 0.0
    %277 = vmatpush1.msra.mxu0 %v79
    %278 = vmatprep.subr.mxu0 0.0
    %279 = vmatpush1.msra.mxu0 %v84
    %280 = vmatprep.subr.mxu0 0.0
    %281 = vmatpush1.msra.mxu0 %v89
    %282 = vmatprep.subr.mxu0 0.0
    %283 = vmatpush1.msra.mxu0 %v94
    %284 = vmatprep.subr.mxu0 0.0
    %285 = vmatpush1.msra.mxu0 %v99
    %286 = vmatprep.subr.mxu0 0.0
    %287 = vmatpush1.msra.mxu0 0.0
    %288 = vmatprep.subr.mxu0 0.0
    %289 = vmatpush1.msra.mxu0 0.0
    %290 = vmatprep.subr.mxu0 0.0
    %291 = vmatpush1.msra.mxu0 0.0
    %292 = vmatprep.subr.mxu0 0.0
    %293 = vmatpush1.msra.mxu0 0.0
    %294 = vmatprep.subr.mxu0 0.0
    %295 = vmatpush1.msra.mxu0 0.0
    %296 = vmatprep.subr.mxu0 0.0
    %297 = vmatpush1.msra.mxu0 0.0
    %298 = vmatprep.subr.mxu0 0.0
    %299 = vmatpush1.msra.mxu0 0.0
    %300 = vmatprep.subr.mxu0 0.0
    %301 = vmatpush1.msra.mxu0 0.0
    %302 = vmatprep.subr.mxu0 0.0
    %303 = vmatpush1.msra.mxu0 0.0
    %304 = vmatprep.subr.mxu0 0.0
    %305 = vmatpush1.msra.mxu0 0.0
    %306 = vmatprep.subr.mxu0 0.0
    %307 = vmatpush1.msra.mxu0 0.0
    %308 = vmatprep.subr.mxu0 0.0
    %309 = vmatpush1.msra.mxu0 0.0
    %310 = vmatprep.subr.mxu0 0.0
    %311 = vmatpush1.msra.mxu0 0.0
    %312 = vmatprep.subr.mxu0 0.0
    %313 = vmatpush1.msra.mxu0 0.0
    %314 = vmatprep.subr.mxu0 0.0
    %315 = vmatpush1.msra.mxu0 0.0
    %316 = vmatprep.subr.mxu0 0.0
    %317 = vmatpush1.msra.mxu0 0.0
    %318 = vmatprep.mubr.f32.mxu0 0.0
    %319 = vmatmul.mubr.f32.gmra.mrb[0].mxu0 %v18
    %v320 = vpop.f32.mrb[0].mxu0
    %v321 = vadd.f32 0.0, %v320
    %v322 = vpop.f32.mrb[0].mxu0
    %323 = vmatprep.mubr.f32.mxu0 0.0
    %324 = vmatmul.mubr.f32.gmra.mrb[0].mxu0 %v19
    %v325 = vpop.f32.mrb[0].mxu0
    %v326 = vadd.f32 0.0, %v325
    %v327 = vpop.f32.mrb[0].mxu0
    %328 = vdwg.mxu0
    %330 = vrot.lane.b32.xlu0 %v169, 64
    %v331 = vpop.permute.xlu0 %330
    %vm332 = vcmask 523264
    %v334 = vsel %vm332, %v167, 0
    %v336 = vsel %vm332, %v331, 0
    %338 = vmatprep.subr.mxu0 0.0
    %339 = vmatpush1.xpose.msra.mxu0 %v336
    %340 = vmatprep.subr.mxu0 0.0
    %341 = vmatpush1.xpose.msra.mxu0 0.0
    %342 = vmatprep.subr.mxu0 0.0
    %343 = vmatpush1.xpose.msra.mxu0 0.0
    %344 = vmatprep.subr.mxu0 0.0
    %345 = vmatpush1.xpose.msra.mxu0 0.0
    %346 = vmatprep.subr.mxu0 0.0
    %347 = vmatpush1.xpose.msra.mxu0 0.0
    %348 = vmatprep.subr.mxu0 0.0
    %349 = vmatpush1.xpose.msra.mxu0 0.0
    %350 = vmatprep.subr.mxu0 0.0
    %351 = vmatpush1.xpose.msra.mxu0 0.0
    %352 = vmatprep.subr.mxu0 0.0
    %353 = vmatpush1.xpose.msra.mxu0 0.0
    %354 = vmatprep.subr.mxu0 0.0
    %355 = vmatpush1.xpose.msra.mxu0 0.0
    %356 = vmatprep.subr.mxu0 0.0
    %357 = vmatpush1.xpose.msra.mxu0 0.0
    %358 = vmatprep.subr.mxu0 0.0
    %359 = vmatpush1.xpose.msra.mxu0 0.0
    %360 = vmatprep.subr.mxu0 0.0
    %361 = vmatpush1.xpose.msra.mxu0 0.0
    %362 = vmatprep.subr.mxu0 0.0
    %363 = vmatpush1.xpose.msra.mxu0 0.0
    %364 = vmatprep.subr.mxu0 0.0
    %365 = vmatpush1.xpose.msra.mxu0 0.0
    %366 = vmatprep.subr.mxu0 0.0
    %367 = vmatpush1.xpose.msra.mxu0 0.0
    %368 = vmatprep.subr.mxu0 0.0
    %369 = vmatpush1.xpose.msra.mxu0 0.0
    %370 = vmatprep.subr.mxu0 0.0
    %371 = vmatpush1.xpose.msra.mxu0 0.0
    %372 = vmatprep.subr.mxu0 0.0
    %373 = vmatpush1.xpose.msra.mxu0 0.0
    %374 = vmatprep.subr.mxu0 0.0
    %375 = vmatpush1.xpose.msra.mxu0 0.0
    %376 = vmatprep.subr.mxu0 0.0
    %377 = vmatpush1.xpose.msra.mxu0 0.0
    %378 = vmatprep.subr.mxu0 0.0
    %379 = vmatpush1.xpose.msra.mxu0 0.0
    %380 = vmatprep.subr.mxu0 0.0
    %381 = vmatpush1.xpose.msra.mxu0 0.0
    %382 = vmatprep.subr.mxu0 0.0
    %383 = vmatpush1.xpose.msra.mxu0 0.0
    %384 = vmatprep.subr.mxu0 0.0
    %385 = vmatpush1.xpose.msra.mxu0 0.0
    %386 = vmatprep.subr.mxu0 0.0
    %387 = vmatpush1.xpose.msra.mxu0 0.0
    %388 = vmatprep.subr.mxu0 0.0
    %389 = vmatpush1.xpose.msra.mxu0 0.0
    %390 = vmatprep.subr.mxu0 0.0
    %391 = vmatpush1.xpose.msra.mxu0 0.0
    %392 = vmatprep.subr.mxu0 0.0
    %393 = vmatpush1.xpose.msra.mxu0 0.0
    %394 = vmatprep.subr.mxu0 0.0
    %395 = vmatpush1.xpose.msra.mxu0 0.0
    %396 = vmatprep.subr.mxu0 0.0
    %397 = vmatpush1.xpose.msra.mxu0 0.0
    %398 = vmatprep.subr.mxu0 0.0
    %399 = vmatpush1.xpose.msra.mxu0 0.0
    %400 = vmatprep.subr.mxu0 0.0
    %401 = vmatpush1.xpose.msra.mxu0 0.0
    %402 = vmatprep.mubr.f32.mxu0 0.0
    %403 = vmatmul.mubr.f32.gmra.mrb[0].mxu0 %v334
    %v404 = vpop.f32.mrb[0].mxu0
    %v405 = vadd.f32 0.0, %v404
    %v406 = vpop.f32.mrb[0].mxu0
    %407 = vdwg.mxu0
    %409 = vrot.lane.b32.xlu0 %v175, 64
    %v410 = vpop.permute.xlu0 %409
    %v412 = vsel %vm332, %v173, 0
    %v414 = vsel %vm332, %v410, 0
    %416 = vmatprep.subr.mxu0 0.0
    %417 = vmatpush1.xpose.msra.mxu0 %v414
    %418 = vmatprep.subr.mxu0 0.0
    %419 = vmatpush1.xpose.msra.mxu0 0.0
    %420 = vmatprep.subr.mxu0 0.0
    %421 = vmatpush1.xpose.msra.mxu0 0.0
    %422 = vmatprep.subr.mxu0 0.0
    %423 = vmatpush1.xpose.msra.mxu0 0.0
    %424 = vmatprep.subr.mxu0 0.0
    %425 = vmatpush1.xpose.msra.mxu0 0.0
    %426 = vmatprep.subr.mxu0 0.0
    %427 = vmatpush1.xpose.msra.mxu0 0.0
    %428 = vmatprep.subr.mxu0 0.0
    %429 = vmatpush1.xpose.msra.mxu0 0.0
    %430 = vmatprep.subr.mxu0 0.0
    %431 = vmatpush1.xpose.msra.mxu0 0.0
    %432 = vmatprep.subr.mxu0 0.0
    %433 = vmatpush1.xpose.msra.mxu0 0.0
    %434 = vmatprep.subr.mxu0 0.0
    %435 = vmatpush1.xpose.msra.mxu0 0.0
    %436 = vmatprep.subr.mxu0 0.0
    %437 = vmatpush1.xpose.msra.mxu0 0.0
    %438 = vmatprep.subr.mxu0 0.0
    %439 = vmatpush1.xpose.msra.mxu0 0.0
    %440 = vmatprep.subr.mxu0 0.0
    %441 = vmatpush1.xpose.msra.mxu0 0.0
    %442 = vmatprep.subr.mxu0 0.0
    %443 = vmatpush1.xpose.msra.mxu0 0.0
    %444 = vmatprep.subr.mxu0 0.0
    %445 = vmatpush1.xpose.msra.mxu0 0.0
    %446 = vmatprep.subr.mxu0 0.0
    %447 = vmatpush1.xpose.msra.mxu0 0.0
    %448 = vmatprep.subr.mxu0 0.0
    %449 = vmatpush1.xpose.msra.mxu0 0.0
    %450 = vmatprep.subr.mxu0 0.0
    %451 = vmatpush1.xpose.msra.mxu0 0.0
    %452 = vmatprep.subr.mxu0 0.0
    %453 = vmatpush1.xpose.msra.mxu0 0.0
    %454 = vmatprep.subr.mxu0 0.0
    %455 = vmatpush1.xpose.msra.mxu0 0.0
    %456 = vmatprep.subr.mxu0 0.0
    %457 = vmatpush1.xpose.msra.mxu0 0.0
    %458 = vmatprep.subr.mxu0 0.0
    %459 = vmatpush1.xpose.msra.mxu0 0.0
    %460 = vmatprep.subr.mxu0 0.0
    %461 = vmatpush1.xpose.msra.mxu0 0.0
    %462 = vmatprep.subr.mxu0 0.0
    %463 = vmatpush1.xpose.msra.mxu0 0.0
    %464 = vmatprep.subr.mxu0 0.0
    %465 = vmatpush1.xpose.msra.mxu0 0.0
    %466 = vmatprep.subr.mxu0 0.0
    %467 = vmatpush1.xpose.msra.mxu0 0.0
    %468 = vmatprep.subr.mxu0 0.0
    %469 = vmatpush1.xpose.msra.mxu0 0.0
    %470 = vmatprep.subr.mxu0 0.0
    %471 = vmatpush1.xpose.msra.mxu0 0.0
    %472 = vmatprep.subr.mxu0 0.0
    %473 = vmatpush1.xpose.msra.mxu0 0.0
    %474 = vmatprep.subr.mxu0 0.0
    %475 = vmatpush1.xpose.msra.mxu0 0.0
    %476 = vmatprep.subr.mxu0 0.0
    %477 = vmatpush1.xpose.msra.mxu0 0.0
    %478 = vmatprep.subr.mxu0 0.0
    %479 = vmatpush1.xpose.msra.mxu0 0.0
    %480 = vmatprep.mubr.f32.mxu0 0.0
    %481 = vmatmul.mubr.f32.gmra.mrb[0].mxu0 %v412
    %v482 = vpop.f32.mrb[0].mxu0
    %v483 = vadd.f32 0.0, %v482
    %v484 = vpop.f32.mrb[0].mxu0
    %485 = vdwg.mxu0
    %vm486 = vcmask 64512
    %v487 = vsel %vm486, %v405, -inf
    %488 = vmax.xlane.f32.xlu0 %v487
    %v489 = vpop.xlane.xlu0 %488
    %v490 = vsel %vm486, %v483, -inf
    %491 = vmax.xlane.f32.xlu0 %v490
    %v492 = vpop.xlane.xlu0 %491
    %v493 = vsub.f32 %v405, %v489
    %v494 = vsub.f32 %v483, %v492
    %v495 = vmul.f32 %v493, 1.442695
    %v496 = vpow.pop %v495
    %v497 = vmul.f32 %v494, 1.442695
    %v498 = vpow.pop %v497
    %v499 = vsel %vm486, %v496, 0.0
    %500 = vadd.xlane.f32.xlu0 %v499
    %v501 = vpop.xlane.xlu0 %500
    %v502 = vsel %vm486, %v498, 0.0
    %503 = vadd.xlane.f32.xlu0 %v502
    %v504 = vpop.xlane.xlu0 %503
    %v505 = vrcp.pop %v501
    %v506 = vmul.f32 %v496, %v505
    %v507 = vrcp.pop %v504
    %v508 = vmul.f32 %v498, %v507
    %v510 = vsel %vm486, %v506, 0
    %512 = vmatprep.subr.mxu0 0.0
    %513 = vmatpush1.msra.mxu0 %v246
    %514 = vmatprep.subr.mxu0 0.0
    %515 = vmatpush1.msra.mxu0 0.0
    %516 = vmatprep.subr.mxu0 0.0
    %517 = vmatpush1.msra.mxu0 0.0
    %518 = vmatprep.subr.mxu0 0.0
    %519 = vmatpush1.msra.mxu0 0.0
    %520 = vmatprep.subr.mxu0 0.0
    %521 = vmatpush1.msra.mxu0 0.0
    %522 = vmatprep.subr.mxu0 0.0
    %523 = vmatpush1.msra.mxu0 0.0
    %524 = vmatprep.subr.mxu0 0.0
    %525 = vmatpush1.msra.mxu0 0.0
    %526 = vmatprep.subr.mxu0 0.0
    %527 = vmatpush1.msra.mxu0 0.0
    %528 = vmatprep.subr.mxu0 0.0
    %529 = vmatpush1.msra.mxu0 0.0
    %530 = vmatprep.subr.mxu0 0.0
    %531 = vmatpush1.msra.mxu0 0.0
    %532 = vmatprep.subr.mxu0 0.0
    %533 = vmatpush1.msra.mxu0 0.0
    %534 = vmatprep.subr.mxu0 0.0
    %535 = vmatpush1.msra.mxu0 0.0
    %536 = vmatprep.subr.mxu0 0.0
    %537 = vmatpush1.msra.mxu0 0.0
    %538 = vmatprep.subr.mxu0 0.0
    %539 = vmatpush1.msra.mxu0 0.0
    %540 = vmatprep.subr.mxu0 0.0
    %541 = vmatpush1.msra.mxu0 0.0
    %542 = vmatprep.subr.mxu0 0.0
    %543 = vmatpush1.msra.mxu0 0.0
    %544 = vmatprep.subr.mxu0 0.0
    %545 = vmatpush1.msra.mxu0 0.0
    %546 = vmatprep.subr.mxu0 0.0
    %547 = vmatpush1.msra.mxu0 0.0
    %548 = vmatprep.subr.mxu0 0.0
    %549 = vmatpush1.msra.mxu0 0.0
    %550 = vmatprep.subr.mxu0 0.0
    %551 = vmatpush1.msra.mxu0 0.0
    %552 = vmatprep.subr.mxu0 0.0
    %553 = vmatpush1.msra.mxu0 0.0
    %554 = vmatprep.subr.mxu0 0.0
    %555 = vmatpush1.msra.mxu0 0.0
    %556 = vmatprep.subr.mxu0 0.0
    %557 = vmatpush1.msra.mxu0 0.0
    %558 = vmatprep.subr.mxu0 0.0
    %559 = vmatpush1.msra.mxu0 0.0
    %560 = vmatprep.subr.mxu0 0.0
    %561 = vmatpush1.msra.mxu0 0.0
    %562 = vmatprep.subr.mxu0 0.0
    %563 = vmatpush1.msra.mxu0 0.0
    %564 = vmatprep.subr.mxu0 0.0
    %565 = vmatpush1.msra.mxu0 0.0
    %566 = vmatprep.subr.mxu0 0.0
    %567 = vmatpush1.msra.mxu0 0.0
    %568 = vmatprep.subr.mxu0 0.0
    %569 = vmatpush1.msra.mxu0 0.0
    %570 = vmatprep.subr.mxu0 0.0
    %571 = vmatpush1.msra.mxu0 0.0
    %572 = vmatprep.subr.mxu0 0.0
    %573 = vmatpush1.msra.mxu0 0.0
    %574 = vmatprep.subr.mxu0 0.0
    %575 = vmatpush1.msra.mxu0 0.0
    %576 = vmatprep.mubr.f32.mxu0 0.0
    %577 = vmatmul.mubr.f32.gmra.mrb[0].mxu0 %v510
    %v578 = vpop.f32.mrb[0].mxu0
    %v579 = vadd.f32 0.0, %v578
    %v580 = vpop.f32.mrb[0].mxu0
    %581 = vdwg.mxu0
    %v583 = vsel %vm486, %v508, 0
    %585 = vmatprep.subr.mxu0 0.0
    %586 = vmatpush1.msra.mxu0 %v252
    %587 = vmatprep.subr.mxu0 0.0
    %588 = vmatpush1.msra.mxu0 0.0
    %589 = vmatprep.subr.mxu0 0.0
    %590 = vmatpush1.msra.mxu0 0.0
    %591 = vmatprep.subr.mxu0 0.0
    %592 = vmatpush1.msra.mxu0 0.0
    %593 = vmatprep.subr.mxu0 0.0
    %594 = vmatpush1.msra.mxu0 0.0
    %595 = vmatprep.subr.mxu0 0.0
    %596 = vmatpush1.msra.mxu0 0.0
    %597 = vmatprep.subr.mxu0 0.0
    %598 = vmatpush1.msra.mxu0 0.0
    %599 = vmatprep.subr.mxu0 0.0
    %600 = vmatpush1.msra.mxu0 0.0
    %601 = vmatprep.subr.mxu0 0.0
    %602 = vmatpush1.msra.mxu0 0.0
    %603 = vmatprep.subr.mxu0 0.0
    %604 = vmatpush1.msra.mxu0 0.0
    %605 = vmatprep.subr.mxu0 0.0
    %606 = vmatpush1.msra.mxu0 0.0
    %607 = vmatprep.subr.mxu0 0.0
    %608 = vmatpush1.msra.mxu0 0.0
    %609 = vmatprep.subr.mxu0 0.0
    %610 = vmatpush1.msra.mxu0 0.0
    %611 = vmatprep.subr.mxu0 0.0
    %612 = vmatpush1.msra.mxu0 0.0
    %613 = vmatprep.subr.mxu0 0.0
    %614 = vmatpush1.msra.mxu0 0.0
    %615 = vmatprep.subr.mxu0 0.0
    %616 = vmatpush1.msra.mxu0 0.0
    %617 = vmatprep.subr.mxu0 0.0
    %618 = vmatpush1.msra.mxu0 0.0
    %619 = vmatprep.subr.mxu0 0.0
    %620 = vmatpush1.msra.mxu0 0.0
    %621 = vmatprep.subr.mxu0 0.0
    %622 = vmatpush1.msra.mxu0 0.0
    %623 = vmatprep.subr.mxu0 0.0
    %624 = vmatpush1.msra.mxu0 0.0
    %625 = vmatprep.subr.mxu0 0.0
    %626 = vmatpush1.msra.mxu0 0.0
    %627 = vmatprep.subr.mxu0 0.0
    %628 = vmatpush1.msra.mxu0 0.0
    %629 = vmatprep.subr.mxu0 0.0
    %630 = vmatpush1.msra.mxu0 0.0
    %631 = vmatprep.subr.mxu0 0.0
    %632 = vmatpush1.msra.mxu0 0.0
    %633 = vmatprep.subr.mxu0 0.0
    %634 = vmatpush1.msra.mxu0 0.0
    %635 = vmatprep.subr.mxu0 0.0
    %636 = vmatpush1.msra.mxu0 0.0
    %637 = vmatprep.subr.mxu0 0.0
    %638 = vmatpush1.msra.mxu0 0.0
    %639 = vmatprep.subr.mxu0 0.0
    %640 = vmatpush1.msra.mxu0 0.0
    %641 = vmatprep.subr.mxu0 0.0
    %642 = vmatpush1.msra.mxu0 0.0
    %643 = vmatprep.subr.mxu0 0.0
    %644 = vmatpush1.msra.mxu0 0.0
    %645 = vmatprep.subr.mxu0 0.0
    %646 = vmatpush1.msra.mxu0 0.0
    %647 = vmatprep.subr.mxu0 0.0
    %648 = vmatpush1.msra.mxu0 0.0
    %649 = vmatprep.mubr.f32.mxu0 0.0
    %650 = vmatmul.mubr.f32.gmra.mrb[0].mxu0 %v583
    %v651 = vpop.f32.mrb[0].mxu0
    %v652 = vadd.f32 0.0, %v651
    %v653 = vpop.f32.mrb[0].mxu0
    %654 = vdwg.mxu0
    %655 = vrot.lane.b32.xlu0 %v167, 64
    %v656 = vpop.permute.xlu0 %655
    %v657 = vsel %vm332, %v656, 0
    %v660 = vsel %vm332, %v244, 0
    %662 = vmatprep.subr.mxu0 0.0
    %663 = vmatpush1.xpose.msra.mxu0 %v660
    %664 = vmatprep.subr.mxu0 0.0
    %665 = vmatpush1.xpose.msra.mxu0 0.0
    %666 = vmatprep.subr.mxu0 0.0
    %667 = vmatpush1.xpose.msra.mxu0 0.0
    %668 = vmatprep.subr.mxu0 0.0
    %669 = vmatpush1.xpose.msra.mxu0 0.0
    %670 = vmatprep.subr.mxu0 0.0
    %671 = vmatpush1.xpose.msra.mxu0 0.0
    %672 = vmatprep.subr.mxu0 0.0
    %673 = vmatpush1.xpose.msra.mxu0 0.0
    %674 = vmatprep.subr.mxu0 0.0
    %675 = vmatpush1.xpose.msra.mxu0 0.0
    %676 = vmatprep.subr.mxu0 0.0
    %677 = vmatpush1.xpose.msra.mxu0 0.0
    %678 = vmatprep.subr.mxu0 0.0
    %679 = vmatpush1.xpose.msra.mxu0 0.0
    %680 = vmatprep.subr.mxu0 0.0
    %681 = vmatpush1.xpose.msra.mxu0 0.0
    %682 = vmatprep.subr.mxu0 0.0
    %683 = vmatpush1.xpose.msra.mxu0 0.0
    %684 = vmatprep.subr.mxu0 0.0
    %685 = vmatpush1.xpose.msra.mxu0 0.0
    %686 = vmatprep.subr.mxu0 0.0
    %687 = vmatpush1.xpose.msra.mxu0 0.0
    %688 = vmatprep.subr.mxu0 0.0
    %689 = vmatpush1.xpose.msra.mxu0 0.0
    %690 = vmatprep.subr.mxu0 0.0
    %691 = vmatpush1.xpose.msra.mxu0 0.0
    %692 = vmatprep.subr.mxu0 0.0
    %693 = vmatpush1.xpose.msra.mxu0 0.0
    %694 = vmatprep.subr.mxu0 0.0
    %695 = vmatpush1.xpose.msra.mxu0 0.0
    %696 = vmatprep.subr.mxu0 0.0
    %697 = vmatpush1.xpose.msra.mxu0 0.0
    %698 = vmatprep.subr.mxu0 0.0
    %699 = vmatpush1.xpose.msra.mxu0 0.0
    %700 = vmatprep.subr.mxu0 0.0
    %701 = vmatpush1.xpose.msra.mxu0 0.0
    %702 = vmatprep.subr.mxu0 0.0
    %703 = vmatpush1.xpose.msra.mxu0 0.0
    %704 = vmatprep.subr.mxu0 0.0
    %705 = vmatpush1.xpose.msra.mxu0 0.0
    %706 = vmatprep.subr.mxu0 0.0
    %707 = vmatpush1.xpose.msra.mxu0 0.0
    %708 = vmatprep.subr.mxu0 0.0
    %709 = vmatpush1.xpose.msra.mxu0 0.0
    %710 = vmatprep.subr.mxu0 0.0
    %711 = vmatpush1.xpose.msra.mxu0 0.0
    %712 = vmatprep.subr.mxu0 0.0
    %713 = vmatpush1.xpose.msra.mxu0 0.0
    %714 = vmatprep.subr.mxu0 0.0
    %715 = vmatpush1.xpose.msra.mxu0 0.0
    %716 = vmatprep.subr.mxu0 0.0
    %717 = vmatpush1.xpose.msra.mxu0 0.0
    %718 = vmatprep.subr.mxu0 0.0
    %719 = vmatpush1.xpose.msra.mxu0 0.0
    %720 = vmatprep.subr.mxu0 0.0
    %721 = vmatpush1.xpose.msra.mxu0 0.0
    %722 = vmatprep.subr.mxu0 0.0
    %723 = vmatpush1.xpose.msra.mxu0 0.0
    %724 = vmatprep.subr.mxu0 0.0
    %725 = vmatpush1.xpose.msra.mxu0 0.0
    %726 = vmatprep.mubr.f32.mxu0 0.0
    %727 = vmatmul.mubr.f32.gmra.mrb[0].mxu0 %v657
    %v728 = vpop.f32.mrb[0].mxu0
    %v729 = vadd.f32 0.0, %v728
    %v730 = vpop.f32.mrb[0].mxu0
    %731 = vdwg.mxu0
    %732 = vrot.lane.b32.xlu0 %v173, 64
    %v733 = vpop.permute.xlu0 %732
    %v734 = vsel %vm332, %v733, 0
    %v737 = vsel %vm332, %v250, 0
    %739 = vmatprep.subr.mxu0 0.0
    %740 = vmatpush1.xpose.msra.mxu0 %v737
    %741 = vmatprep.subr.mxu0 0.0
    %742 = vmatpush1.xpose.msra.mxu0 0.0
    %743 = vmatprep.subr.mxu0 0.0
    %744 = vmatpush1.xpose.msra.mxu0 0.0
    %745 = vmatprep.subr.mxu0 0.0
    %746 = vmatpush1.xpose.msra.mxu0 0.0
    %747 = vmatprep.subr.mxu0 0.0
    %748 = vmatpush1.xpose.msra.mxu0 0.0
    %749 = vmatprep.subr.mxu0 0.0
    %750 = vmatpush1.xpose.msra.mxu0 0.0
    %751 = vmatprep.subr.mxu0 0.0
    %752 = vmatpush1.xpose.msra.mxu0 0.0
    %753 = vmatprep.subr.mxu0 0.0
    %754 = vmatpush1.xpose.msra.mxu0 0.0
    %755 = vmatprep.subr.mxu0 0.0
    %756 = vmatpush1.xpose.msra.mxu0 0.0
    %757 = vmatprep.subr.mxu0 0.0
    %758 = vmatpush1.xpose.msra.mxu0 0.0
    %759 = vmatprep.subr.mxu0 0.0
    %760 = vmatpush1.xpose.msra.mxu0 0.0
    %761 = vmatprep.subr.mxu0 0.0
    %762 = vmatpush1.xpose.msra.mxu0 0.0
    %763 = vmatprep.subr.mxu0 0.0
    %764 = vmatpush1.xpose.msra.mxu0 0.0
    %765 = vmatprep.subr.mxu0 0.0
    %766 = vmatpush1.xpose.msra.mxu0 0.0
    %767 = vmatprep.subr.mxu0 0.0
    %768 = vmatpush1.xpose.msra.mxu0 0.0
    %769 = vmatprep.subr.mxu0 0.0
    %770 = vmatpush1.xpose.msra.mxu0 0.0
    %771 = vmatprep.subr.mxu0 0.0
    %772 = vmatpush1.xpose.msra.mxu0 0.0
    %773 = vmatprep.subr.mxu0 0.0
    %774 = vmatpush1.xpose.msra.mxu0 0.0
    %775 = vmatprep.subr.mxu0 0.0
    %776 = vmatpush1.xpose.msra.mxu0 0.0
    %777 = vmatprep.subr.mxu0 0.0
    %778 = vmatpush1.xpose.msra.mxu0 0.0
    %779 = vmatprep.subr.mxu0 0.0
    %780 = vmatpush1.xpose.msra.mxu0 0.0
    %781 = vmatprep.subr.mxu0 0.0
    %782 = vmatpush1.xpose.msra.mxu0 0.0
    %783 = vmatprep.subr.mxu0 0.0
    %784 = vmatpush1.xpose.msra.mxu0 0.0
    %785 = vmatprep.subr.mxu0 0.0
    %786 = vmatpush1.xpose.msra.mxu0 0.0
    %787 = vmatprep.subr.mxu0 0.0
    %788 = vmatpush1.xpose.msra.mxu0 0.0
    %789 = vmatprep.subr.mxu0 0.0
    %790 = vmatpush1.xpose.msra.mxu0 0.0
    %791 = vmatprep.subr.mxu0 0.0
    %792 = vmatpush1.xpose.msra.mxu0 0.0
    %793 = vmatprep.subr.mxu0 0.0
    %794 = vmatpush1.xpose.msra.mxu0 0.0
    %795 = vmatprep.subr.mxu0 0.0
    %796 = vmatpush1.xpose.msra.mxu0 0.0
    %797 = vmatprep.subr.mxu0 0.0
    %798 = vmatpush1.xpose.msra.mxu0 0.0
    %799 = vmatprep.subr.mxu0 0.0
    %800 = vmatpush1.xpose.msra.mxu0 0.0
    %801 = vmatprep.subr.mxu0 0.0
    %802 = vmatpush1.xpose.msra.mxu0 0.0
    %803 = vmatprep.mubr.f32.mxu0 0.0
    %804 = vmatmul.mubr.f32.gmra.mrb[0].mxu0 %v734
    %v805 = vpop.f32.mrb[0].mxu0
    %v806 = vadd.f32 0.0, %v805
    %v807 = vpop.f32.mrb[0].mxu0
    %808 = vdwg.mxu0
    %v809 = vsel %vm486, %v729, -inf
    %810 = vmax.xlane.f32.xlu0 %v809
    %v811 = vpop.xlane.xlu0 %810
    %v812 = vsel %vm486, %v806, -inf
    %813 = vmax.xlane.f32.xlu0 %v812
    %v814 = vpop.xlane.xlu0 %813
    %v815 = vsub.f32 %v729, %v811
    %v816 = vsub.f32 %v806, %v814
    %v817 = vmul.f32 %v815, 1.442695
    %v818 = vpow.pop %v817
    %v819 = vmul.f32 %v816, 1.442695
    %v820 = vpow.pop %v819
    %v821 = vsel %vm486, %v818, 0.0
    %822 = vadd.xlane.f32.xlu0 %v821
    %v823 = vpop.xlane.xlu0 %822
    %v824 = vsel %vm486, %v820, 0.0
    %825 = vadd.xlane.f32.xlu0 %v824
    %v826 = vpop.xlane.xlu0 %825
    %v827 = vrcp.pop %v823
    %v828 = vmul.f32 %v818, %v827
    %v829 = vrcp.pop %v826
    %v830 = vmul.f32 %v820, %v829
    %832 = vrot.lane.b32.xlu0 %v246, 64
    %v833 = vpop.permute.xlu0 %832
    %v836 = vsel %vm486, %v828, 0
    %838 = vmatprep.subr.mxu0 0.0
    %839 = vmatpush1.msra.mxu0 %v833
    %840 = vmatprep.subr.mxu0 0.0
    %841 = vmatpush1.msra.mxu0 0.0
    %842 = vmatprep.subr.mxu0 0.0
    %843 = vmatpush1.msra.mxu0 0.0
    %844 = vmatprep.subr.mxu0 0.0
    %845 = vmatpush1.msra.mxu0 0.0
    %846 = vmatprep.subr.mxu0 0.0
    %847 = vmatpush1.msra.mxu0 0.0
    %848 = vmatprep.subr.mxu0 0.0
    %849 = vmatpush1.msra.mxu0 0.0
    %850 = vmatprep.subr.mxu0 0.0
    %851 = vmatpush1.msra.mxu0 0.0
    %852 = vmatprep.subr.mxu0 0.0
    %853 = vmatpush1.msra.mxu0 0.0
    %854 = vmatprep.subr.mxu0 0.0
    %855 = vmatpush1.msra.mxu0 0.0
    %856 = vmatprep.subr.mxu0 0.0
    %857 = vmatpush1.msra.mxu0 0.0
    %858 = vmatprep.subr.mxu0 0.0
    %859 = vmatpush1.msra.mxu0 0.0
    %860 = vmatprep.subr.mxu0 0.0
    %861 = vmatpush1.msra.mxu0 0.0
    %862 = vmatprep.subr.mxu0 0.0
    %863 = vmatpush1.msra.mxu0 0.0
    %864 = vmatprep.subr.mxu0 0.0
    %865 = vmatpush1.msra.mxu0 0.0
    %866 = vmatprep.subr.mxu0 0.0
    %867 = vmatpush1.msra.mxu0 0.0
    %868 = vmatprep.subr.mxu0 0.0
    %869 = vmatpush1.msra.mxu0 0.0
    %870 = vmatprep.subr.mxu0 0.0
    %871 = vmatpush1.msra.mxu0 0.0
    %872 = vmatprep.subr.mxu0 0.0
    %873 = vmatpush1.msra.mxu0 0.0
    %874 = vmatprep.subr.mxu0 0.0
    %875 = vmatpush1.msra.mxu0 0.0
    %876 = vmatprep.subr.mxu0 0.0
    %877 = vmatpush1.msra.mxu0 0.0
    %878 = vmatprep.subr.mxu0 0.0
    %879 = vmatpush1.msra.mxu0 0.0
    %880 = vmatprep.subr.mxu0 0.0
    %881 = vmatpush1.msra.mxu0 0.0
    %882 = vmatprep.subr.mxu0 0.0
    %883 = vmatpush1.msra.mxu0 0.0
    %884 = vmatprep.subr.mxu0 0.0
    %885 = vmatpush1.msra.mxu0 0.0
    %886 = vmatprep.subr.mxu0 0.0
    %887 = vmatpush1.msra.mxu0 0.0
    %888 = vmatprep.subr.mxu0 0.0
    %889 = vmatpush1.msra.mxu0 0.0
    %890 = vmatprep.subr.mxu0 0.0
    %891 = vmatpush1.msra.mxu0 0.0
    %892 = vmatprep.subr.mxu0 0.0
    %893 = vmatpush1.msra.mxu0 0.0
    %894 = vmatprep.subr.mxu0 0.0
    %895 = vmatpush1.msra.mxu0 0.0
    %896 = vmatprep.subr.mxu0 0.0
    %897 = vmatpush1.msra.mxu0 0.0
    %898 = vmatprep.subr.mxu0 0.0
    %899 = vmatpush1.msra.mxu0 0.0
    %900 = vmatprep.subr.mxu0 0.0
    %901 = vmatpush1.msra.mxu0 0.0
    %902 = vmatprep.mubr.f32.mxu0 0.0
    %903 = vmatmul.mubr.f32.gmra.mrb[0].mxu0 %v836
    %v904 = vpop.f32.mrb[0].mxu0
    %v905 = vadd.f32 0.0, %v904
    %v906 = vpop.f32.mrb[0].mxu0
    %907 = vdwg.mxu0
    %909 = vrot.lane.b32.xlu0 %v252, 64
    %v910 = vpop.permute.xlu0 %909
    %v913 = vsel %vm486, %v830, 0
    %915 = vmatprep.subr.mxu0 0.0
    %916 = vmatpush1.msra.mxu0 %v910
    %917 = vmatprep.subr.mxu0 0.0
    %918 = vmatpush1.msra.mxu0 0.0
    %919 = vmatprep.subr.mxu0 0.0
    %920 = vmatpush1.msra.mxu0 0.0
    %921 = vmatprep.subr.mxu0 0.0
    %922 = vmatpush1.msra.mxu0 0.0
    %923 = vmatprep.subr.mxu0 0.0
    %924 = vmatpush1.msra.mxu0 0.0
    %925 = vmatprep.subr.mxu0 0.0
    %926 = vmatpush1.msra.mxu0 0.0
    %927 = vmatprep.subr.mxu0 0.0
    %928 = vmatpush1.msra.mxu0 0.0
    %929 = vmatprep.subr.mxu0 0.0
    %930 = vmatpush1.msra.mxu0 0.0
    %931 = vmatprep.subr.mxu0 0.0
    %932 = vmatpush1.msra.mxu0 0.0
    %933 = vmatprep.subr.mxu0 0.0
    %934 = vmatpush1.msra.mxu0 0.0
    %935 = vmatprep.subr.mxu0 0.0
    %936 = vmatpush1.msra.mxu0 0.0
    %937 = vmatprep.subr.mxu0 0.0
    %938 = vmatpush1.msra.mxu0 0.0
    %939 = vmatprep.subr.mxu0 0.0
    %940 = vmatpush1.msra.mxu0 0.0
    %941 = vmatprep.subr.mxu0 0.0
    %942 = vmatpush1.msra.mxu0 0.0
    %943 = vmatprep.subr.mxu0 0.0
    %944 = vmatpush1.msra.mxu0 0.0
    %945 = vmatprep.subr.mxu0 0.0
    %946 = vmatpush1.msra.mxu0 0.0
    %947 = vmatprep.subr.mxu0 0.0
    %948 = vmatpush1.msra.mxu0 0.0
    %949 = vmatprep.subr.mxu0 0.0
    %950 = vmatpush1.msra.mxu0 0.0
    %951 = vmatprep.subr.mxu0 0.0
    %952 = vmatpush1.msra.mxu0 0.0
    %953 = vmatprep.subr.mxu0 0.0
    %954 = vmatpush1.msra.mxu0 0.0
    %955 = vmatprep.subr.mxu0 0.0
    %956 = vmatpush1.msra.mxu0 0.0
    %957 = vmatprep.subr.mxu0 0.0
    %958 = vmatpush1.msra.mxu0 0.0
    %959 = vmatprep.subr.mxu0 0.0
    %960 = vmatpush1.msra.mxu0 0.0
    %961 = vmatprep.subr.mxu0 0.0
    %962 = vmatpush1.msra.mxu0 0.0
    %963 = vmatprep.subr.mxu0 0.0
    %964 = vmatpush1.msra.mxu0 0.0
    %965 = vmatprep.subr.mxu0 0.0
    %966 = vmatpush1.msra.mxu0 0.0
    %967 = vmatprep.subr.mxu0 0.0
    %968 = vmatpush1.msra.mxu0 0.0
    %969 = vmatprep.subr.mxu0 0.0
    %970 = vmatpush1.msra.mxu0 0.0
    %971 = vmatprep.subr.mxu0 0.0
    %972 = vmatpush1.msra.mxu0 0.0
    %973 = vmatprep.subr.mxu0 0.0
    %974 = vmatpush1.msra.mxu0 0.0
    %975 = vmatprep.subr.mxu0 0.0
    %976 = vmatpush1.msra.mxu0 0.0
    %977 = vmatprep.subr.mxu0 0.0
    %978 = vmatpush1.msra.mxu0 0.0
    %979 = vmatprep.mubr.f32.mxu0 0.0
    %980 = vmatmul.mubr.f32.gmra.mrb[0].mxu0 %v913
    %v981 = vpop.f32.mrb[0].mxu0
    %v982 = vadd.f32 0.0, %v981
    %v983 = vpop.f32.mrb[0].mxu0
    %984 = vdwg.mxu0
    %985 = vrot.lane.b32.xlu0 %v244, 64
    %v986 = vpop.permute.xlu0 %985
    %v987 = vsel %vm332, %v169, 0
    %v989 = vsel %vm332, %v986, 0
    %991 = vmatprep.subr.mxu0 0.0
    %992 = vmatpush1.xpose.msra.mxu0 %v989
    %993 = vmatprep.subr.mxu0 0.0
    %994 = vmatpush1.xpose.msra.mxu0 0.0
    %995 = vmatprep.subr.mxu0 0.0
    %996 = vmatpush1.xpose.msra.mxu0 0.0
    %997 = vmatprep.subr.mxu0 0.0
    %998 = vmatpush1.xpose.msra.mxu0 0.0
    %999 = vmatprep.subr.mxu0 0.0
    %1000 = vmatpush1.xpose.msra.mxu0 0.0
    %1001 = vmatprep.subr.mxu0 0.0
    %1002 = vmatpush1.xpose.msra.mxu0 0.0
    %1003 = vmatprep.subr.mxu0 0.0
    %1004 = vmatpush1.xpose.msra.mxu0 0.0
    %1005 = vmatprep.subr.mxu0 0.0
    %1006 = vmatpush1.xpose.msra.mxu0 0.0
    %1007 = vmatprep.subr.mxu0 0.0
    %1008 = vmatpush1.xpose.msra.mxu0 0.0
    %1009 = vmatprep.subr.mxu0 0.0
    %1010 = vmatpush1.xpose.msra.mxu0 0.0
    %1011 = vmatprep.subr.mxu0 0.0
    %1012 = vmatpush1.xpose.msra.mxu0 0.0
    %1013 = vmatprep.subr.mxu0 0.0
    %1014 = vmatpush1.xpose.msra.mxu0 0.0
    %1015 = vmatprep.subr.mxu0 0.0
    %1016 = vmatpush1.xpose.msra.mxu0 0.0
    %1017 = vmatprep.subr.mxu0 0.0
    %1018 = vmatpush1.xpose.msra.mxu0 0.0
    %1019 = vmatprep.subr.mxu0 0.0
    %1020 = vmatpush1.xpose.msra.mxu0 0.0
    %1021 = vmatprep.subr.mxu0 0.0
    %1022 = vmatpush1.xpose.msra.mxu0 0.0
    %1023 = vmatprep.subr.mxu0 0.0
    %1024 = vmatpush1.xpose.msra.mxu0 0.0
    %1025 = vmatprep.subr.mxu0 0.0
    %1026 = vmatpush1.xpose.msra.mxu0 0.0
    %1027 = vmatprep.subr.mxu0 0.0
    %1028 = vmatpush1.xpose.msra.mxu0 0.0
    %1029 = vmatprep.subr.mxu0 0.0
    %1030 = vmatpush1.xpose.msra.mxu0 0.0
    %1031 = vmatprep.subr.mxu0 0.0
    %1032 = vmatpush1.xpose.msra.mxu0 0.0
    %1033 = vmatprep.subr.mxu0 0.0
    %1034 = vmatpush1.xpose.msra.mxu0 0.0
    %1035 = vmatprep.subr.mxu0 0.0
    %1036 = vmatpush1.xpose.msra.mxu0 0.0
    %1037 = vmatprep.subr.mxu0 0.0
    %1038 = vmatpush1.xpose.msra.mxu0 0.0
    %1039 = vmatprep.subr.mxu0 0.0
    %1040 = vmatpush1.xpose.msra.mxu0 0.0
    %1041 = vmatprep.subr.mxu0 0.0
    %1042 = vmatpush1.xpose.msra.mxu0 0.0
    %1043 = vmatprep.subr.mxu0 0.0
    %1044 = vmatpush1.xpose.msra.mxu0 0.0
    %1045 = vmatprep.subr.mxu0 0.0
    %1046 = vmatpush1.xpose.msra.mxu0 0.0
    %1047 = vmatprep.subr.mxu0 0.0
    %1048 = vmatpush1.xpose.msra.mxu0 0.0
    %1049 = vmatprep.subr.mxu0 0.0
    %1050 = vmatpush1.xpose.msra.mxu0 0.0
    %1051 = vmatprep.subr.mxu0 0.0
    %1052 = vmatpush1.xpose.msra.mxu0 0.0
    %1053 = vmatprep.subr.mxu0 0.0
    %1054 = vmatpush1.xpose.msra.mxu0 0.0
    %1055 = vmatprep.mubr.f32.mxu0 0.0
    %1056 = vmatmul.mubr.f32.gmra.mrb[0].mxu0 %v987
    %v1057 = vpop.f32.mrb[0].mxu0
    %v1058 = vadd.f32 0.0, %v1057
    %v1059 = vpop.f32.mrb[0].mxu0
    %1060 = vdwg.mxu0
    %1061 = vrot.lane.b32.xlu0 %v250, 64
    %v1062 = vpop.permute.xlu0 %1061
    %v1063 = vsel %vm332, %v175, 0
    %v1065 = vsel %vm332, %v1062, 0
    %1067 = vmatprep.subr.mxu0 0.0
    %1068 = vmatpush1.xpose.msra.mxu0 %v1065
    %1069 = vmatprep.subr.mxu0 0.0
    %1070 = vmatpush1.xpose.msra.mxu0 0.0
    %1071 = vmatprep.subr.mxu0 0.0
    %1072 = vmatpush1.xpose.msra.mxu0 0.0
    %1073 = vmatprep.subr.mxu0 0.0
    %1074 = vmatpush1.xpose.msra.mxu0 0.0
    %1075 = vmatprep.subr.mxu0 0.0
    %1076 = vmatpush1.xpose.msra.mxu0 0.0
    %1077 = vmatprep.subr.mxu0 0.0
    %1078 = vmatpush1.xpose.msra.mxu0 0.0
    %1079 = vmatprep.subr.mxu0 0.0
    %1080 = vmatpush1.xpose.msra.mxu0 0.0
    %1081 = vmatprep.subr.mxu0 0.0
    %1082 = vmatpush1.xpose.msra.mxu0 0.0
    %1083 = vmatprep.subr.mxu0 0.0
    %1084 = vmatpush1.xpose.msra.mxu0 0.0
    %1085 = vmatprep.subr.mxu0 0.0
    %1086 = vmatpush1.xpose.msra.mxu0 0.0
    %1087 = vmatprep.subr.mxu0 0.0
    %1088 = vmatpush1.xpose.msra.mxu0 0.0
    %1089 = vmatprep.subr.mxu0 0.0
    %1090 = vmatpush1.xpose.msra.mxu0 0.0
    %1091 = vmatprep.subr.mxu0 0.0
    %1092 = vmatpush1.xpose.msra.mxu0 0.0
    %1093 = vmatprep.subr.mxu0 0.0
    %1094 = vmatpush1.xpose.msra.mxu0 0.0
    %1095 = vmatprep.subr.mxu0 0.0
    %1096 = vmatpush1.xpose.msra.mxu0 0.0
    %1097 = vmatprep.subr.mxu0 0.0
    %1098 = vmatpush1.xpose.msra.mxu0 0.0
    %1099 = vmatprep.subr.mxu0 0.0
    %1100 = vmatpush1.xpose.msra.mxu0 0.0
    %1101 = vmatprep.subr.mxu0 0.0
    %1102 = vmatpush1.xpose.msra.mxu0 0.0
    %1103 = vmatprep.subr.mxu0 0.0
    %1104 = vmatpush1.xpose.msra.mxu0 0.0
    %1105 = vmatprep.subr.mxu0 0.0
    %1106 = vmatpush1.xpose.msra.mxu0 0.0
    %1107 = vmatprep.subr.mxu0 0.0
    %1108 = vmatpush1.xpose.msra.mxu0 0.0
    %1109 = vmatprep.subr.mxu0 0.0
    %1110 = vmatpush1.xpose.msra.mxu0 0.0
    %1111 = vmatprep.subr.mxu0 0.0
    %1112 = vmatpush1.xpose.msra.mxu0 0.0
    %1113 = vmatprep.subr.mxu0 0.0
    %1114 = vmatpush1.xpose.msra.mxu0 0.0
    %1115 = vmatprep.subr.mxu0 0.0
    %1116 = vmatpush1.xpose.msra.mxu0 0.0
    %1117 = vmatprep.subr.mxu0 0.0
    %1118 = vmatpush1.xpose.msra.mxu0 0.0
    %1119 = vmatprep.subr.mxu0 0.0
    %1120 = vmatpush1.xpose.msra.mxu0 0.0
    %1121 = vmatprep.subr.mxu0 0.0
    %1122 = vmatpush1.xpose.msra.mxu0 0.0
    %1123 = vmatprep.subr.mxu0 0.0
    %1124 = vmatpush1.xpose.msra.mxu0 0.0
    %1125 = vmatprep.subr.mxu0 0.0
    %1126 = vmatpush1.xpose.msra.mxu0 0.0
    %1127 = vmatprep.subr.mxu0 0.0
    %1128 = vmatpush1.xpose.msra.mxu0 0.0
    %1129 = vmatprep.subr.mxu0 0.0
    %1130 = vmatpush1.xpose.msra.mxu0 0.0
    %1131 = vmatprep.mubr.f32.mxu0 0.0
    %1132 = vmatmul.mubr.f32.gmra.mrb[0].mxu0 %v1063
    %v1133 = vpop.f32.mrb[0].mxu0
    %v1134 = vadd.f32 0.0, %v1133
    %v1135 = vpop.f32.mrb[0].mxu0
    %1136 = vdwg.mxu0
    %v1137 = vsel %vm486, %v1058, -inf
    %1138 = vmax.xlane.f32.xlu0 %v1137
    %v1139 = vpop.xlane.xlu0 %1138
    %v1140 = vsel %vm486, %v1134, -inf
    %1141 = vmax.xlane.f32.xlu0 %v1140
    %v1142 = vpop.xlane.xlu0 %1141
    %v1143 = vsub.f32 %v1058, %v1139
    %v1144 = vsub.f32 %v1134, %v1142
    %v1145 = vmul.f32 %v1143, 1.442695
    %v1146 = vpow.pop %v1145
    %v1147 = vmul.f32 %v1144, 1.442695
    %v1148 = vpow.pop %v1147
    %v1149 = vsel %vm486, %v1146, 0.0
    %1150 = vadd.xlane.f32.xlu0 %v1149
    %v1151 = vpop.xlane.xlu0 %1150
    %v1152 = vsel %vm486, %v1148, 0.0
    %1153 = vadd.xlane.f32.xlu0 %v1152
    %v1154 = vpop.xlane.xlu0 %1153
    %v1155 = vrcp.pop %v1151
    %v1156 = vmul.f32 %v1146, %v1155
    %v1157 = vrcp.pop %v1154
    %v1158 = vmul.f32 %v1148, %v1157
    %v1160 = vsel %vm486, %v1156, 0
    %1162 = vmatprep.subr.mxu0 0.0
    %1163 = vmatpush1.msra.mxu0 %v321
    %1164 = vmatprep.subr.mxu0 0.0
    %1165 = vmatpush1.msra.mxu0 0.0
    %1166 = vmatprep.subr.mxu0 0.0
    %1167 = vmatpush1.msra.mxu0 0.0
    %1168 = vmatprep.subr.mxu0 0.0
    %1169 = vmatpush1.msra.mxu0 0.0
    %1170 = vmatprep.subr.mxu0 0.0
    %1171 = vmatpush1.msra.mxu0 0.0
    %1172 = vmatprep.subr.mxu0 0.0
    %1173 = vmatpush1.msra.mxu0 0.0
    %1174 = vmatprep.subr.mxu0 0.0
    %1175 = vmatpush1.msra.mxu0 0.0
    %1176 = vmatprep.subr.mxu0 0.0
    %1177 = vmatpush1.msra.mxu0 0.0
    %1178 = vmatprep.subr.mxu0 0.0
    %1179 = vmatpush1.msra.mxu0 0.0
    %1180 = vmatprep.subr.mxu0 0.0
    %1181 = vmatpush1.msra.mxu0 0.0
    %1182 = vmatprep.subr.mxu0 0.0
    %1183 = vmatpush1.msra.mxu0 0.0
    %1184 = vmatprep.subr.mxu0 0.0
    %1185 = vmatpush1.msra.mxu0 0.0
    %1186 = vmatprep.subr.mxu0 0.0
    %1187 = vmatpush1.msra.mxu0 0.0
    %1188 = vmatprep.subr.mxu0 0.0
    %1189 = vmatpush1.msra.mxu0 0.0
    %1190 = vmatprep.subr.mxu0 0.0
    %1191 = vmatpush1.msra.mxu0 0.0
    %1192 = vmatprep.subr.mxu0 0.0
    %1193 = vmatpush1.msra.mxu0 0.0
    %1194 = vmatprep.subr.mxu0 0.0
    %1195 = vmatpush1.msra.mxu0 0.0
    %1196 = vmatprep.subr.mxu0 0.0
    %1197 = vmatpush1.msra.mxu0 0.0
    %1198 = vmatprep.subr.mxu0 0.0
    %1199 = vmatpush1.msra.mxu0 0.0
    %1200 = vmatprep.subr.mxu0 0.0
    %1201 = vmatpush1.msra.mxu0 0.0
    %1202 = vmatprep.subr.mxu0 0.0
    %1203 = vmatpush1.msra.mxu0 0.0
    %1204 = vmatprep.subr.mxu0 0.0
    %1205 = vmatpush1.msra.mxu0 0.0
    %1206 = vmatprep.subr.mxu0 0.0
    %1207 = vmatpush1.msra.mxu0 0.0
    %1208 = vmatprep.subr.mxu0 0.0
    %1209 = vmatpush1.msra.mxu0 0.0
    %1210 = vmatprep.subr.mxu0 0.0
    %1211 = vmatpush1.msra.mxu0 0.0
    %1212 = vmatprep.subr.mxu0 0.0
    %1213 = vmatpush1.msra.mxu0 0.0
    %1214 = vmatprep.subr.mxu0 0.0
    %1215 = vmatpush1.msra.mxu0 0.0
    %1216 = vmatprep.subr.mxu0 0.0
    %1217 = vmatpush1.msra.mxu0 0.0
    %1218 = vmatprep.subr.mxu0 0.0
    %1219 = vmatpush1.msra.mxu0 0.0
    %1220 = vmatprep.subr.mxu0 0.0
    %1221 = vmatpush1.msra.mxu0 0.0
    %1222 = vmatprep.subr.mxu0 0.0
    %1223 = vmatpush1.msra.mxu0 0.0
    %1224 = vmatprep.subr.mxu0 0.0
    %1225 = vmatpush1.msra.mxu0 0.0
    %1226 = vmatprep.mubr.f32.mxu0 0.0
    %1227 = vmatmul.mubr.f32.gmra.mrb[0].mxu0 %v1160
    %v1228 = vpop.f32.mrb[0].mxu0
    %v1229 = vadd.f32 0.0, %v1228
    %v1230 = vpop.f32.mrb[0].mxu0
    %1231 = vdwg.mxu0
    %v1233 = vsel %vm486, %v1158, 0
    %1235 = vmatprep.subr.mxu0 0.0
    %1236 = vmatpush1.msra.mxu0 %v326
    %1237 = vmatprep.subr.mxu0 0.0
    %1238 = vmatpush1.msra.mxu0 0.0
    %1239 = vmatprep.subr.mxu0 0.0
    %1240 = vmatpush1.msra.mxu0 0.0
    %1241 = vmatprep.subr.mxu0 0.0
    %1242 = vmatpush1.msra.mxu0 0.0
    %1243 = vmatprep.subr.mxu0 0.0
    %1244 = vmatpush1.msra.mxu0 0.0
    %1245 = vmatprep.subr.mxu0 0.0
    %1246 = vmatpush1.msra.mxu0 0.0
    %1247 = vmatprep.subr.mxu0 0.0
    %1248 = vmatpush1.msra.mxu0 0.0
    %1249 = vmatprep.subr.mxu0 0.0
    %1250 = vmatpush1.msra.mxu0 0.0
    %1251 = vmatprep.subr.mxu0 0.0
    %1252 = vmatpush1.msra.mxu0 0.0
    %1253 = vmatprep.subr.mxu0 0.0
    %1254 = vmatpush1.msra.mxu0 0.0
    %1255 = vmatprep.subr.mxu0 0.0
    %1256 = vmatpush1.msra.mxu0 0.0
    %1257 = vmatprep.subr.mxu0 0.0
    %1258 = vmatpush1.msra.mxu0 0.0
    %1259 = vmatprep.subr.mxu0 0.0
    %1260 = vmatpush1.msra.mxu0 0.0
    %1261 = vmatprep.subr.mxu0 0.0
    %1262 = vmatpush1.msra.mxu0 0.0
    %1263 = vmatprep.subr.mxu0 0.0
    %1264 = vmatpush1.msra.mxu0 0.0
    %1265 = vmatprep.subr.mxu0 0.0
    %1266 = vmatpush1.msra.mxu0 0.0
    %1267 = vmatprep.subr.mxu0 0.0
    %1268 = vmatpush1.msra.mxu0 0.0
    %1269 = vmatprep.subr.mxu0 0.0
    %1270 = vmatpush1.msra.mxu0 0.0
    %1271 = vmatprep.subr.mxu0 0.0
    %1272 = vmatpush1.msra.mxu0 0.0
    %1273 = vmatprep.subr.mxu0 0.0
    %1274 = vmatpush1.msra.mxu0 0.0
    %1275 = vmatprep.subr.mxu0 0.0
    %1276 = vmatpush1.msra.mxu0 0.0
    %1277 = vmatprep.subr.mxu0 0.0
    %1278 = vmatpush1.msra.mxu0 0.0
    %1279 = vmatprep.subr.mxu0 0.0
    %1280 = vmatpush1.msra.mxu0 0.0
    %1281 = vmatprep.subr.mxu0 0.0
    %1282 = vmatpush1.msra.mxu0 0.0
    %1283 = vmatprep.subr.mxu0 0.0
    %1284 = vmatpush1.msra.mxu0 0.0
    %1285 = vmatprep.subr.mxu0 0.0
    %1286 = vmatpush1.msra.mxu0 0.0
    %1287 = vmatprep.subr.mxu0 0.0
    %1288 = vmatpush1.msra.mxu0 0.0
    %1289 = vmatprep.subr.mxu0 0.0
    %1290 = vmatpush1.msra.mxu0 0.0
    %1291 = vmatprep.subr.mxu0 0.0
    %1292 = vmatpush1.msra.mxu0 0.0
    %1293 = vmatprep.subr.mxu0 0.0
    %1294 = vmatpush1.msra.mxu0 0.0
    %1295 = vmatprep.subr.mxu0 0.0
    %1296 = vmatpush1.msra.mxu0 0.0
    %1297 = vmatprep.subr.mxu0 0.0
    %1298 = vmatpush1.msra.mxu0 0.0
    %1299 = vmatprep.mubr.f32.mxu0 0.0
    %1300 = vmatmul.mubr.f32.gmra.mrb[0].mxu0 %v1233
    %v1301 = vpop.f32.mrb[0].mxu0
    %v1302 = vadd.f32 0.0, %v1301
    %v1303 = vpop.f32.mrb[0].mxu0
    %1304 = vdwg.mxu0
    %1307 = vrot.lane.b32.xlu0 %v905, 64
    %v1308 = vpop.permute.xlu0 %1307
    %1309 = vrot.lane.b32.xlu0 %v982, 64
    %v1310 = vpop.permute.xlu0 %1309
    %v1313 = vsel %vm332, %v579, %v1308
    %v1314 = vsel %vm332, %v652, %v1310
    %v1315 = vld [vmem:[%s2] sm:$0xff]
    %v1316 = vld [vmem:[%s2 + $0x8] sm:$0xff]
    %v1317 = vld [vmem:[%s2 + $0x10] sm:$0xff]
    %v1318 = vld [vmem:[%s2 + $0x18] sm:$0xff]
    %v1319 = vld [vmem:[%s2 + $0x20] sm:$0xff]
    %v1320 = vld [vmem:[%s2 + $0x28] sm:$0xff]
    %v1321 = vld [vmem:[%s2 + $0x30] sm:$0xff]
    %v1322 = vld [vmem:[%s2 + $0x38] sm:$0xff]
    %v1323 = vld [vmem:[%s2 + $0x40] sm:$0xff]
    %v1324 = vld [vmem:[%s2 + $0x48] sm:$0xff]
    %v1325 = vld [vmem:[%s2 + $0x50] sm:$0xff]
    %v1326 = vld [vmem:[%s2 + $0x58] sm:$0xff]
    %v1327 = vld [vmem:[%s2 + $0x60] sm:$0xff]
    %v1328 = vld [vmem:[%s2 + $0x68] sm:$0xff]
    %v1329 = vld [vmem:[%s2 + $0x70] sm:$0xff]
    %v1330 = vld [vmem:[%s2 + $0x78] sm:$0xff]
    %v1331 = vld [vmem:[%s2 + $0x80] sm:$0xff]
    %v1332 = vld [vmem:[%s2 + $0x88] sm:$0xff]
    %v1333 = vld [vmem:[%s2 + $0x90] sm:$0xff]
    %v1334 = vld [vmem:[%s2 + $0x98] sm:$0xff]
    %v1335 = vld [vmem:[%s2 + $0xa0] sm:$0xff]
    %v1336 = vld [vmem:[%s2 + $0xa8] sm:$0xff]
    %v1337 = vld [vmem:[%s2 + $0xb0] sm:$0xff]
    %v1338 = vld [vmem:[%s2 + $0xb8] sm:$0xff]
    %v1339 = vld [vmem:[%s3] sm:$0x1]
    %v1341 = vlaneseq
    %v1342 = vshrl.u32 %v1341, 7
    %v1343 = vsub.s32 0, %v1342
    %v1344 = vrot.slane %v1339, %v1343
    %v1347 = vsel %vm332, %v1229, 0
    %v1350 = vsel %vm332, %v1302, 0
    %1352 = vmatprep.subr.mxu0 0.0
    %1353 = vmatpush1.msra.mxu0 %v1315
    %1354 = vmatprep.subr.mxu0 0.0
    %1355 = vmatpush1.msra.mxu0 %v1316
    %1356 = vmatprep.subr.mxu0 0.0
    %1357 = vmatpush1.msra.mxu0 %v1317
    %1358 = vmatprep.subr.mxu0 0.0
    %1359 = vmatpush1.msra.mxu0 %v1318
    %1360 = vmatprep.subr.mxu0 0.0
    %1361 = vmatpush1.msra.mxu0 %v1319
    %1362 = vmatprep.subr.mxu0 0.0
    %1363 = vmatpush1.msra.mxu0 %v1320
    %1364 = vmatprep.subr.mxu0 0.0
    %1365 = vmatpush1.msra.mxu0 %v1321
    %1366 = vmatprep.subr.mxu0 0.0
    %1367 = vmatpush1.msra.mxu0 %v1322
    %1368 = vmatprep.subr.mxu0 0.0
    %1369 = vmatpush1.msra.mxu0 %v1323
    %1370 = vmatprep.subr.mxu0 0.0
    %1371 = vmatpush1.msra.mxu0 %v1324
    %1372 = vmatprep.subr.mxu0 0.0
    %1373 = vmatpush1.msra.mxu0 %v1325
    %1374 = vmatprep.subr.mxu0 0.0
    %1375 = vmatpush1.msra.mxu0 %v1326
    %1376 = vmatprep.subr.mxu0 0.0
    %1377 = vmatpush1.msra.mxu0 %v1327
    %1378 = vmatprep.subr.mxu0 0.0
    %1379 = vmatpush1.msra.mxu0 %v1328
    %1380 = vmatprep.subr.mxu0 0.0
    %1381 = vmatpush1.msra.mxu0 %v1329
    %1382 = vmatprep.subr.mxu0 0.0
    %1383 = vmatpush1.msra.mxu0 %v1330
    %1384 = vmatprep.subr.mxu0 0.0
    %1385 = vmatpush1.msra.mxu0 %v1331
    %1386 = vmatprep.subr.mxu0 0.0
    %1387 = vmatpush1.msra.mxu0 %v1332
    %1388 = vmatprep.subr.mxu0 0.0
    %1389 = vmatpush1.msra.mxu0 %v1333
    %1390 = vmatprep.subr.mxu0 0.0
    %1391 = vmatpush1.msra.mxu0 %v1334
    %1392 = vmatprep.subr.mxu0 0.0
    %1393 = vmatpush1.msra.mxu0 %v1335
    %1394 = vmatprep.subr.mxu0 0.0
    %1395 = vmatpush1.msra.mxu0 %v1336
    %1396 = vmatprep.subr.mxu0 0.0
    %1397 = vmatpush1.msra.mxu0 %v1337
    %1398 = vmatprep.subr.mxu0 0.0
    %1399 = vmatpush1.msra.mxu0 %v1338
    %1400 = vmatprep.subr.mxu0 0.0
    %1401 = vmatpush1.msra.mxu0 0.0
    %1402 = vmatprep.subr.mxu0 0.0
    %1403 = vmatpush1.msra.mxu0 0.0
    %1404 = vmatprep.subr.mxu0 0.0
    %1405 = vmatpush1.msra.mxu0 0.0
    %1406 = vmatprep.subr.mxu0 0.0
    %1407 = vmatpush1.msra.mxu0 0.0
    %1408 = vmatprep.subr.mxu0 0.0
    %1409 = vmatpush1.msra.mxu0 0.0
    %1410 = vmatprep.subr.mxu0 0.0
    %1411 = vmatpush1.msra.mxu0 0.0
    %1412 = vmatprep.subr.mxu0 0.0
    %1413 = vmatpush1.msra.mxu0 0.0
    %1414 = vmatprep.subr.mxu0 0.0
    %1415 = vmatpush1.msra.mxu0 0.0
    %1416 = vmatprep.mubr.f32.mxu0 %v1347
    %1417 = vmatmul.mubr.f32.gmra.mrb[0].mxu0 %v1313
    %v1418 = vpop.f32.mrb[0].mxu0
    %v1419 = vadd.f32 %v1344, %v1418
    %v1420 = vpop.f32.mrb[0].mxu0
    %1421 = vmatprep.mubr.f32.mxu0 %v1350
    %1422 = vmatmul.mubr.f32.gmra.mrb[0].mxu0 %v1314
    %v1423 = vpop.f32.mrb[0].mxu0
    %v1424 = vadd.f32 %v1344, %v1423
    %v1425 = vpop.f32.mrb[0].mxu0
    %1426 = vdwg.mxu0
    %1427 = vst [vmem:[#allocation2] sm:$0xff] %v1419
    %1428 = vst [vmem:[#allocation2 + $0x8] sm:$0xff] %v1424
    // Predicated region
    $region18: #{tpu_custom_call.1} parent=1 // pred_check
      _
    $region19: #{tpu_custom_call.1} parent=1 // pred_check_branch
      %1430 = sbr.rel (0) target = $region21
    $region20: #{tpu_custom_call.1} parent=1 // pred_region
      %s1432 = ssub.s32 256, 256
      %1433 = vsyncadd [#allocation3], %s1432
      %s1434 = sshll.u32 [#allocation2], 4
      %s1435 = int_to_ptr.vmem [resolvable:$true] %s1434
      %1440 = dma.vmem_to_hbm [thread:$0]  %s1435, 256, %s4, [#allocation3], 128, 128, 8
    $region21: #{tpu_custom_call.1} parent=1 // pred_fallthru
      _
    // Predicated region
    $region22: #{tpu_custom_call.1} parent=1 // pred_check
      _
    $region23: #{tpu_custom_call.1} parent=1 // pred_check_branch
      %1442 = sbr.rel (0) target = $region25
    $region24: #{tpu_custom_call.1} parent=1 // pred_region
      %1443 = dma.done [#allocation3], 256
    $region25: #{tpu_custom_call.1} parent=1 // pred_fallthru
      _
    %1444 = vsyncpa [#allocation3], 1

</llo_original>
